<compile_context>
chip_gen: v7x
topology: tpu7x:2x2x1
jax: 0.10.0
libtpu: 0.0.40
codegen_flags: <defaults>
</compile_context>

<pallas_src>
import math
from functools import partial

import jax
import jax.numpy as jnp
from jax import lax
from jax.experimental import pallas as pl
from jax.experimental.pallas import tpu as pltpu


def _round_up(x: int, m: int) -> int:
    return ((x + m - 1) // m) * m


def _make_snn_chunk_kernel(alpha: float, beta: float):
    """One grid step == one chunk of T_CHUNK sequential SNN time steps."""
    one_minus_beta = 1.0 - beta

    def kernel(x_ref, win_ref, v1_ref, mem0_ref, syn0_ref,
               mem_out_ref, syn_out_ref, spk_out_ref,
               mem_sc, syn_sc, xin_sc):
        t_chunk, b_blk, i_pad = x_ref.shape
        h_pad = v1_ref.shape[0]

        # Load the initial state at the first time-chunk of this batch block.
        @pl.when(pl.program_id(1) == 0)
        def _():
            mem_sc[...] = mem0_ref[...]
            syn_sc[...] = syn0_ref[...]

        # Hoist the state-independent input projection out of the recurrence:
        # one (T_CHUNK*B, I) @ (I, H) bf16 MXU matmul per chunk.
        xb = x_ref[...].astype(jnp.bfloat16).reshape(t_chunk * b_blk, i_pad)
        xin = jnp.dot(xb, win_ref[...], preferred_element_type=jnp.float32)
        xin_sc[...] = xin.reshape(t_chunk, b_blk, h_pad)

        def step(i, carry):
            mem, syn = carry                              # f32 (B_BLK, H_pad)
            spiked = mem >= 1.0                           # Heaviside(mem - 1)
            out = spiked.astype(jnp.bfloat16)             # exactly 0/1 -> lossless
            # Recurrent current: (B_BLK, H) @ (H, H), bf16 in / f32 accumulate.
            rec = jnp.dot(out, v1_ref[...],
                          preferred_element_type=jnp.float32)
            new_syn = alpha * syn + xin_sc[i] + rec
            # (beta*mem + (1-beta)*syn) * (1 - out)  with out in {0, 1}:
            new_mem = jnp.where(spiked, 0.0,
                                beta * mem + one_minus_beta * syn)
            mem_out_ref[i] = new_mem
            syn_out_ref[i] = new_syn
            spk_out_ref[i] = out
            return new_mem, new_syn

        mem, syn = lax.fori_loop(0, t_chunk, step,
                                 (mem_sc[...], syn_sc[...]), unroll=True)
        mem_sc[...] = mem
        syn_sc[...] = syn

    return kernel


def snn_recurrence(x_all, mem0, syn0, win_t, v1_t, alpha, beta, *, t_chunk=32):
    """Scan the SNNLayer cell over time.

    x_all: (T, B, I) f32, time-major.  mem0/syn0: (B, H) f32 initial state.
    win_t: (I, H) = Win.weight.T; v1_t: (H, H) = v1.weight.T.
    Returns (mem_hist, syn_hist, spike_hist), each (T, B, H) f32.
    """
    T, B, I = x_all.shape
    H = v1_t.shape[0]

    # Lane/sublane-dense padded shapes (zero padding is exact: padded hidden
    # units never reach threshold and their weight rows/cols are zero).
    i_pad = _round_up(I, 128)
    h_pad = _round_up(H, 128)
    b_blk = min(128, _round_up(B, 8))
    b_pad = _round_up(B, b_blk)
    nb = b_pad // b_blk
    tc = min(t_chunk, T)
    t_pad = _round_up(T, tc)
    nt = t_pad // tc

    x_p = jnp.pad(x_all.astype(jnp.float32),
                  ((0, t_pad - T), (0, b_pad - B), (0, i_pad - I)))
    win_p = jnp.pad(win_t.astype(jnp.bfloat16),
                    ((0, i_pad - I), (0, h_pad - H)))
    v1_p = jnp.pad(v1_t.astype(jnp.bfloat16),
                   ((0, h_pad - H), (0, h_pad - H)))
    mem0_p = jnp.pad(mem0.astype(jnp.float32),
                     ((0, b_pad - B), (0, h_pad - H)))
    syn0_p = jnp.pad(syn0.astype(jnp.float32),
                     ((0, b_pad - B), (0, h_pad - H)))

    # VMEM budget: double-buffered blocks + resident weights + scratch, with
    # headroom, capped for v7x's 64 MiB VMEM.
    # Weights have constant index_maps so they are only fetched once; on v7x
    # with very large H use pipeline_mode=pl.Buffered(1) on the weight specs
    # to drop their second buffer.
    est = (2 * tc * b_blk * i_pad * 4                 # x blocks (f32)
           + 2 * (i_pad + h_pad) * h_pad * 2          # weights (bf16)
           + 2 * 2 * b_blk * h_pad * 4                # mem0 / syn0 blocks
           + 2 * 2 * tc * b_blk * h_pad * 4           # mem / syn out blocks
           + 2 * tc * b_blk * h_pad * 2               # spike out blocks (bf16)
           + 2 * b_blk * h_pad * 4                    # state scratch
           + tc * b_blk * h_pad * 4)                  # hoisted Win(x) scratch
    vmem_limit = int(min(64 * 1024 * 1024, max(32 * 1024 * 1024, 2 * est)))

    kernel = _make_snn_chunk_kernel(alpha, beta)

    mem_p, syn_p, spk_p = pl.pallas_call(
        kernel,
        out_shape=(
            jax.ShapeDtypeStruct((t_pad, b_pad, h_pad), jnp.float32),
            jax.ShapeDtypeStruct((t_pad, b_pad, h_pad), jnp.float32),
            jax.ShapeDtypeStruct((t_pad, b_pad, h_pad), jnp.bfloat16),
        ),
        grid_spec=pltpu.PrefetchScalarGridSpec(
            num_scalar_prefetch=0,
            grid=(nb, nt),                               # (batch blocks, time chunks)
            in_specs=[
                pl.BlockSpec((tc, b_blk, i_pad), lambda b, t: (t, b, 0)),  # x chunk
                pl.BlockSpec((i_pad, h_pad), lambda b, t: (0, 0)),         # Win^T
                pl.BlockSpec((h_pad, h_pad), lambda b, t: (0, 0)),         # v1^T
                pl.BlockSpec((b_blk, h_pad), lambda b, t: (b, 0)),         # mem0
                pl.BlockSpec((b_blk, h_pad), lambda b, t: (b, 0)),         # syn0
            ],
            out_specs=[
                pl.BlockSpec((tc, b_blk, h_pad), lambda b, t: (t, b, 0)),  # mem hist
                pl.BlockSpec((tc, b_blk, h_pad), lambda b, t: (t, b, 0)),  # syn hist
                pl.BlockSpec((tc, b_blk, h_pad), lambda b, t: (t, b, 0)),  # spikes
            ],
            scratch_shapes=[
                pltpu.VMEM((b_blk, h_pad), jnp.float32),      # mem state
                pltpu.VMEM((b_blk, h_pad), jnp.float32),      # syn state
                pltpu.VMEM((tc, b_blk, h_pad), jnp.float32),  # hoisted Win(x)
            ],
        ),
        compiler_params=pltpu.CompilerParams(
            # Batch blocks are independent -> megacore-parallel on v7x.
            # Time must stay sequential.
            dimension_semantics=("parallel", "arbitrary"),
            vmem_limit_bytes=vmem_limit,
        ),
    )(x_p, win_p, v1_p, mem0_p, syn0_p)

    mem_hist = mem_p[:T, :B, :H]
    syn_hist = syn_p[:T, :B, :H]
    spk_hist = spk_p[:T, :B, :H].astype(jnp.float32)   # 0/1 -> lossless cast back
    return mem_hist, syn_hist, spk_hist


def snn_layer_forward(state, x_all, params, *, tau_mem, tau_syn, time_step,
                      t_chunk=32):
    """Scan of SNNLayer.forward over a time-major input sequence.

    state: (B, 2H) initial [mem | syn].  x_all: (T, B, I).
    Returns (final_state, (state_history, spike_history)) — the stacked
    per-step outputs of the PyTorch cell: state_history[t] == next_state_t,
    spike_history[t] == out_t (spikes computed from the state entering step t).
    """
    delta_t = 1.0 / time_step
    alpha = math.exp(-delta_t / tau_syn)
    beta = math.exp(-delta_t / tau_mem)

    H = params["v1_w"].shape[0]
    mem0, syn0 = state[..., :H], state[..., H:]
    win_t = params["win_w"].T        # nn.Linear stores (out, in); kernel uses (in, out)
    v1_t = params["v1_w"].T

    mem_hist, syn_hist, spk_hist = snn_recurrence(
        x_all, mem0, syn0, win_t, v1_t, alpha, beta, t_chunk=t_chunk)

    state_hist = jnp.concatenate([mem_hist, syn_hist], axis=-1)   # (T, B, 2H)
    final_state = state_hist[-1]
    return final_state, (state_hist, spk_hist)


def init_params(key, nb_inputs, nb_hidden, sigma_Win=0.01, sigma_v1=0.01,
                mu_Win=0.0, mu_v1=0.0):
    k1, k2 = jax.random.split(key)
    win_std = sigma_Win / math.sqrt(nb_inputs)
    v1_std = sigma_v1 / math.sqrt(nb_hidden)
    win_w = mu_Win + win_std * jax.random.normal(k1, (nb_hidden, nb_inputs),
                                                 jnp.float32)
    v1_w = mu_v1 + v1_std * jax.random.normal(k2, (nb_hidden, nb_hidden),
                                              jnp.float32)
    return {"win_w": win_w, "v1_w": v1_w}


if __name__ == "__main__":
    # Small shapes consistent with the module's forward.
    T, B, I, H = 8, 2, 4, 32
    tau_mem, tau_syn, time_step = 0.02, 0.01, 100.0      # delta_t = 0.01

    key = jax.random.PRNGKey(0)
    kx, kp, km, ks = jax.random.split(key, 4)
    x_all = jax.random.normal(kx, (T, B, I), jnp.float32)          # (T, B, I)
    params = init_params(kp, I, H)
    # Initial state with some membranes above threshold so spikes actually fire.
    mem0 = jax.random.uniform(km, (B, H), jnp.float32, 0.0, 2.0)
    syn0 = 0.1 * jax.random.normal(ks, (B, H), jnp.float32)
    state0 = jnp.concatenate([mem0, syn0], axis=-1)                # (B, 2H)

    fwd = jax.jit(partial(snn_layer_forward, tau_mem=tau_mem,
                          tau_syn=tau_syn, time_step=time_step))
    final_state, (state_hist, spike_hist) = fwd(state0, x_all, params)
    jax.block_until_ready((final_state, state_hist, spike_hist))

    assert final_state.shape == (B, 2 * H)
    assert state_hist.shape == (T, B, 2 * H)
    assert spike_hist.shape == (T, B, H)
    assert bool(jnp.all((spike_hist == 0.0) | (spike_hist == 1.0)))
    print("KERNEL_OK")
</pallas_src>

<mosaic_0001>
module attributes {stable_mosaic.version = 11 : i64} {
  func.func @kernel(%arg0: i32, %arg1: i32, %arg2: memref<8x8x128xf32, #tpu.memory_space<vmem>>, %arg3: memref<128x128xbf16, #tpu.memory_space<vmem>>, %arg4: memref<128x128xbf16, #tpu.memory_space<vmem>>, %arg5: memref<8x128xf32, #tpu.memory_space<vmem>>, %arg6: memref<8x128xf32, #tpu.memory_space<vmem>>, %arg7: memref<8x8x128xf32, #tpu.memory_space<vmem>>, %arg8: memref<8x8x128xf32, #tpu.memory_space<vmem>>, %arg9: memref<8x8x128xbf16, #tpu.memory_space<vmem>>, %arg10: memref<8x128xf32, #tpu.memory_space<vmem>>, %arg11: memref<8x128xf32, #tpu.memory_space<vmem>>, %arg12: memref<8x8x128xf32, #tpu.memory_space<vmem>>) attributes {dimension_semantics = [#tpu.dimension_semantics<parallel>, #tpu.dimension_semantics<arbitrary>], iteration_bounds = array<i64: 1, 1>, scalar_prefetch = 0 : i64, scratch_operands = 3 : i64, tpu.core_type = #tpu.core_type<tc>, window_params = [{transform_indices = @transform_0, window_bounds = array<i64: 8, 8, 128>}, {pipeline_mode = #tpu.pipeline_mode<synchronous>, transform_indices = @transform_1, window_bounds = array<i64: 128, 128>}, {pipeline_mode = #tpu.pipeline_mode<synchronous>, transform_indices = @transform_2, window_bounds = array<i64: 128, 128>}, {transform_indices = @transform_3, window_bounds = array<i64: 8, 128>}, {transform_indices = @transform_4, window_bounds = array<i64: 8, 128>}, {transform_indices = @transform_5, window_bounds = array<i64: 8, 8, 128>}, {transform_indices = @transform_6, window_bounds = array<i64: 8, 8, 128>}, {transform_indices = @transform_7, window_bounds = array<i64: 8, 8, 128>}]} {
    %c0_i32 = arith.constant 0 : i32
    %0 = arith.cmpi eq, %arg1, %c0_i32 : i32
    %1 = arith.extui %0 : i1 to i32
    %c0_i32_0 = arith.constant 0 : i32
    %2 = arith.cmpi ne, %1, %c0_i32_0 : i32
    scf.if %2 {
      %c0_145 = arith.constant 0 : index
      %c0_146 = arith.constant 0 : index
      %278 = vector.load %arg5[%c0_145, %c0_146] : memref<8x128xf32, #tpu.memory_space<vmem>>, vector<8x128xf32>
      %c0_147 = arith.constant 0 : index
      %c0_148 = arith.constant 0 : index
      %279 = vector.load %arg10[%c0_147, %c0_148] : memref<8x128xf32, #tpu.memory_space<vmem>>, vector<8x128xf32>
      tpu.vector_store %arg10[%c0_147, %c0_148], %278 {strides = array<i32>} : memref<8x128xf32, #tpu.memory_space<vmem>>, vector<8x128xf32>,
      %c0_149 = arith.constant 0 : index
      %c0_150 = arith.constant 0 : index
      %280 = vector.load %arg6[%c0_149, %c0_150] : memref<8x128xf32, #tpu.memory_space<vmem>>, vector<8x128xf32>
      %c0_151 = arith.constant 0 : index
      %c0_152 = arith.constant 0 : index
      %281 = vector.load %arg11[%c0_151, %c0_152] : memref<8x128xf32, #tpu.memory_space<vmem>>, vector<8x128xf32>
      tpu.vector_store %arg11[%c0_151, %c0_152], %280 {strides = array<i32>} : memref<8x128xf32, #tpu.memory_space<vmem>>, vector<8x128xf32>,
    } else {
    }
    %c0 = arith.constant 0 : index
    %c0_1 = arith.constant 0 : index
    %c0_2 = arith.constant 0 : index
    %3 = vector.load %arg2[%c0, %c0_1, %c0_2] : memref<8x8x128xf32, #tpu.memory_space<vmem>>, vector<8x8x128xf32>
    %4 = arith.truncf %3 : vector<8x8x128xf32> to vector<8x8x128xbf16>
    %5 = vector.shape_cast %4 : vector<8x8x128xbf16> to vector<64x128xbf16>
    %c0_3 = arith.constant 0 : index
    %c0_4 = arith.constant 0 : index
    %6 = vector.load %arg3[%c0_3, %c0_4] : memref<128x128xbf16, #tpu.memory_space<vmem>>, vector<128x128xbf16>
    %cst = arith.constant dense<0.000000e+00> : vector<64x128xf32>
    %7 = tpu.matmul %5, %6, %cst {dimension_numbers = #tpu.dot_dimension_numbers<[1], [0], [0], [1], [0, 0, 1, 1], [], []>} : vector<64x128xbf16>, vector<128x128xbf16>, vector<64x128xf32> -> vector<64x128xf32>
    %8 = vector.shape_cast %7 : vector<64x128xf32> to vector<8x8x128xf32>
    %c0_5 = arith.constant 0 : index
    %c0_6 = arith.constant 0 : index
    %c0_7 = arith.constant 0 : index
    %9 = vector.load %arg12[%c0_5, %c0_6, %c0_7] : memref<8x8x128xf32, #tpu.memory_space<vmem>>, vector<8x8x128xf32>
    tpu.vector_store %arg12[%c0_5, %c0_6, %c0_7], %8 {strides = array<i32>} : memref<8x8x128xf32, #tpu.memory_space<vmem>>, vector<8x8x128xf32>,
    %c0_8 = arith.constant 0 : index
    %c0_9 = arith.constant 0 : index
    %10 = vector.load %arg10[%c0_8, %c0_9] : memref<8x128xf32, #tpu.memory_space<vmem>>, vector<8x128xf32>
    %c0_10 = arith.constant 0 : index
    %c0_11 = arith.constant 0 : index
    %11 = vector.load %arg11[%c0_10, %c0_11] : memref<8x128xf32, #tpu.memory_space<vmem>>, vector<8x128xf32>
    %c0_i32_12 = arith.constant 0 : i32
    %cst_13 = arith.constant 1.000000e+00 : f32
    %12 = vector.broadcast %cst_13 : f32 to vector<8x128xf32>
    %13 = arith.cmpf oge, %10, %12 : vector<8x128xf32>
    %14 = arith.extui %13 : vector<8x128xi1> to vector<8x128xi32>
    %15 = arith.sitofp %14 : vector<8x128xi32> to vector<8x128xf32>
    %16 = arith.truncf %15 : vector<8x128xf32> to vector<8x128xbf16>
    %c0_14 = arith.constant 0 : index
    %c0_15 = arith.constant 0 : index
    %17 = vector.load %arg4[%c0_14, %c0_15] : memref<128x128xbf16, #tpu.memory_space<vmem>>, vector<128x128xbf16>
    %cst_16 = arith.constant dense<0.000000e+00> : vector<8x128xf32>
    %18 = tpu.matmul %16, %17, %cst_16 {dimension_numbers = #tpu.dot_dimension_numbers<[1], [0], [0], [1], [0, 0, 1, 1], [], []>} : vector<8x128xbf16>, vector<128x128xbf16>, vector<8x128xf32> -> vector<8x128xf32>
    %cst_17 = arith.constant 0.36787945 : f32
    %19 = vector.broadcast %cst_17 : f32 to vector<8x128xf32>
    %20 = arith.mulf %19, %11 : vector<8x128xf32>
    %21 = arith.index_cast %c0_i32_12 : i32 to index
    %c0_18 = arith.constant 0 : index
    %c0_19 = arith.constant 0 : index
    %22 = vector.load %arg12[%21, %c0_18, %c0_19] : memref<8x8x128xf32, #tpu.memory_space<vmem>>, vector<1x8x128xf32>
    %23 = vector.shape_cast %22 : vector<1x8x128xf32> to vector<8x128xf32>
    %24 = arith.addf %20, %23 : vector<8x128xf32>
    %25 = arith.addf %24, %18 : vector<8x128xf32>
    %cst_20 = arith.constant 0.606530666 : f32
    %26 = vector.broadcast %cst_20 : f32 to vector<8x128xf32>
    %27 = arith.mulf %26, %10 : vector<8x128xf32>
    %cst_21 = arith.constant 0.393469334 : f32
    %28 = vector.broadcast %cst_21 : f32 to vector<8x128xf32>
    %29 = arith.mulf %28, %11 : vector<8x128xf32>
    %30 = arith.addf %27, %29 : vector<8x128xf32>
    %cst_22 = arith.constant 0.000000e+00 : f32
    %31 = vector.broadcast %cst_22 : f32 to vector<8x128xf32>
    %32 = arith.select %13, %31, %30 : vector<8x128xi1>, vector<8x128xf32>
    %33 = arith.index_cast %c0_i32_12 : i32 to index
    %c0_23 = arith.constant 0 : index
    %c0_24 = arith.constant 0 : index
    %34 = vector.load %arg7[%33, %c0_23, %c0_24] : memref<8x8x128xf32, #tpu.memory_space<vmem>>, vector<1x8x128xf32>
    %35 = vector.shape_cast %34 : vector<1x8x128xf32> to vector<8x128xf32>
    %36 = vector.shape_cast %32 : vector<8x128xf32> to vector<1x8x128xf32>
    tpu.vector_store %arg7[%33, %c0_23, %c0_24], %36 {strides = array<i32>} : memref<8x8x128xf32, #tpu.memory_space<vmem>>, vector<1x8x128xf32>,
    %37 = arith.index_cast %c0_i32_12 : i32 to index
    %c0_25 = arith.constant 0 : index
    %c0_26 = arith.constant 0 : index
    %38 = vector.load %arg8[%37, %c0_25, %c0_26] : memref<8x8x128xf32, #tpu.memory_space<vmem>>, vector<1x8x128xf32>
    %39 = vector.shape_cast %38 : vector<1x8x128xf32> to vector<8x128xf32>
    %40 = vector.shape_cast %25 : vector<8x128xf32> to vector<1x8x128xf32>
    tpu.vector_store %arg8[%37, %c0_25, %c0_26], %40 {strides = array<i32>} : memref<8x8x128xf32, #tpu.memory_space<vmem>>, vector<1x8x128xf32>,
    %41 = arith.index_cast %c0_i32_12 : i32 to index
    %c0_27 = arith.constant 0 : index
    %c0_28 = arith.constant 0 : index
    %42 = vector.load %arg9[%41, %c0_27, %c0_28] : memref<8x8x128xbf16, #tpu.memory_space<vmem>>, vector<1x8x128xbf16>
    %43 = vector.shape_cast %42 : vector<1x8x128xbf16> to vector<8x128xbf16>
    %44 = vector.shape_cast %16 : vector<8x128xbf16> to vector<1x8x128xbf16>
    tpu.vector_store %arg9[%41, %c0_27, %c0_28], %44 {strides = array<i32>} : memref<8x8x128xbf16, #tpu.memory_space<vmem>>, vector<1x8x128xbf16>,
    %c1_i32 = arith.constant 1 : i32
    %cst_29 = arith.constant 1.000000e+00 : f32
    %45 = vector.broadcast %cst_29 : f32 to vector<8x128xf32>
    %46 = arith.cmpf oge, %32, %45 : vector<8x128xf32>
    %47 = arith.extui %46 : vector<8x128xi1> to vector<8x128xi32>
    %48 = arith.sitofp %47 : vector<8x128xi32> to vector<8x128xf32>
    %49 = arith.truncf %48 : vector<8x128xf32> to vector<8x128xbf16>
    %c0_30 = arith.constant 0 : index
    %c0_31 = arith.constant 0 : index
    %50 = vector.load %arg4[%c0_30, %c0_31] : memref<128x128xbf16, #tpu.memory_space<vmem>>, vector<128x128xbf16>
    %cst_32 = arith.constant dense<0.000000e+00> : vector<8x128xf32>
    %51 = tpu.matmul %49, %50, %cst_32 {dimension_numbers = #tpu.dot_dimension_numbers<[1], [0], [0], [1], [0, 0, 1, 1], [], []>} : vector<8x128xbf16>, vector<128x128xbf16>, vector<8x128xf32> -> vector<8x128xf32>
    %cst_33 = arith.constant 0.36787945 : f32
    %52 = vector.broadcast %cst_33 : f32 to vector<8x128xf32>
    %53 = arith.mulf %52, %25 : vector<8x128xf32>
    %54 = arith.index_cast %c1_i32 : i32 to index
    %c0_34 = arith.constant 0 : index
    %c0_35 = arith.constant 0 : index
    %55 = vector.load %arg12[%54, %c0_34, %c0_35] : memref<8x8x128xf32, #tpu.memory_space<vmem>>, vector<1x8x128xf32>
    %56 = vector.shape_cast %55 : vector<1x8x128xf32> to vector<8x128xf32>
    %57 = arith.addf %53, %56 : vector<8x128xf32>
    %58 = arith.addf %57, %51 : vector<8x128xf32>
    %cst_36 = arith.constant 0.606530666 : f32
    %59 = vector.broadcast %cst_36 : f32 to vector<8x128xf32>
    %60 = arith.mulf %59, %32 : vector<8x128xf32>
    %cst_37 = arith.constant 0.393469334 : f32
    %61 = vector.broadcast %cst_37 : f32 to vector<8x128xf32>
    %62 = arith.mulf %61, %25 : vector<8x128xf32>
    %63 = arith.addf %60, %62 : vector<8x128xf32>
    %cst_38 = arith.constant 0.000000e+00 : f32
    %64 = vector.broadcast %cst_38 : f32 to vector<8x128xf32>
    %65 = arith.select %46, %64, %63 : vector<8x128xi1>, vector<8x128xf32>
    %66 = arith.index_cast %c1_i32 : i32 to index
    %c0_39 = arith.constant 0 : index
    %c0_40 = arith.constant 0 : index
    %67 = vector.load %arg7[%66, %c0_39, %c0_40] : memref<8x8x128xf32, #tpu.memory_space<vmem>>, vector<1x8x128xf32>
    %68 = vector.shape_cast %67 : vector<1x8x128xf32> to vector<8x128xf32>
    %69 = vector.shape_cast %65 : vector<8x128xf32> to vector<1x8x128xf32>
    tpu.vector_store %arg7[%66, %c0_39, %c0_40], %69 {strides = array<i32>} : memref<8x8x128xf32, #tpu.memory_space<vmem>>, vector<1x8x128xf32>,
    %70 = arith.index_cast %c1_i32 : i32 to index
    %c0_41 = arith.constant 0 : index
    %c0_42 = arith.constant 0 : index
    %71 = vector.load %arg8[%70, %c0_41, %c0_42] : memref<8x8x128xf32, #tpu.memory_space<vmem>>, vector<1x8x128xf32>
    %72 = vector.shape_cast %71 : vector<1x8x128xf32> to vector<8x128xf32>
    %73 = vector.shape_cast %58 : vector<8x128xf32> to vector<1x8x128xf32>
    tpu.vector_store %arg8[%70, %c0_41, %c0_42], %73 {strides = array<i32>} : memref<8x8x128xf32, #tpu.memory_space<vmem>>, vector<1x8x128xf32>,
    %74 = arith.index_cast %c1_i32 : i32 to index
    %c0_43 = arith.constant 0 : index
    %c0_44 = arith.constant 0 : index
    %75 = vector.load %arg9[%74, %c0_43, %c0_44] : memref<8x8x128xbf16, #tpu.memory_space<vmem>>, vector<1x8x128xbf16>
    %76 = vector.shape_cast %75 : vector<1x8x128xbf16> to vector<8x128xbf16>
    %77 = vector.shape_cast %49 : vector<8x128xbf16> to vector<1x8x128xbf16>
    tpu.vector_store %arg9[%74, %c0_43, %c0_44], %77 {strides = array<i32>} : memref<8x8x128xbf16, #tpu.memory_space<vmem>>, vector<1x8x128xbf16>,
    %c2_i32 = arith.constant 2 : i32
    %cst_45 = arith.constant 1.000000e+00 : f32
    %78 = vector.broadcast %cst_45 : f32 to vector<8x128xf32>
    %79 = arith.cmpf oge, %65, %78 : vector<8x128xf32>
    %80 = arith.extui %79 : vector<8x128xi1> to vector<8x128xi32>
    %81 = arith.sitofp %80 : vector<8x128xi32> to vector<8x128xf32>
    %82 = arith.truncf %81 : vector<8x128xf32> to vector<8x128xbf16>
    %c0_46 = arith.constant 0 : index
    %c0_47 = arith.constant 0 : index
    %83 = vector.load %arg4[%c0_46, %c0_47] : memref<128x128xbf16, #tpu.memory_space<vmem>>, vector<128x128xbf16>
    %cst_48 = arith.constant dense<0.000000e+00> : vector<8x128xf32>
    %84 = tpu.matmul %82, %83, %cst_48 {dimension_numbers = #tpu.dot_dimension_numbers<[1], [0], [0], [1], [0, 0, 1, 1], [], []>} : vector<8x128xbf16>, vector<128x128xbf16>, vector<8x128xf32> -> vector<8x128xf32>
    %cst_49 = arith.constant 0.36787945 : f32
    %85 = vector.broadcast %cst_49 : f32 to vector<8x128xf32>
    %86 = arith.mulf %85, %58 : vector<8x128xf32>
    %87 = arith.index_cast %c2_i32 : i32 to index
    %c0_50 = arith.constant 0 : index
    %c0_51 = arith.constant 0 : index
    %88 = vector.load %arg12[%87, %c0_50, %c0_51] : memref<8x8x128xf32, #tpu.memory_space<vmem>>, vector<1x8x128xf32>
    %89 = vector.shape_cast %88 : vector<1x8x128xf32> to vector<8x128xf32>
    %90 = arith.addf %86, %89 : vector<8x128xf32>
    %91 = arith.addf %90, %84 : vector<8x128xf32>
    %cst_52 = arith.constant 0.606530666 : f32
    %92 = vector.broadcast %cst_52 : f32 to vector<8x128xf32>
    %93 = arith.mulf %92, %65 : vector<8x128xf32>
    %cst_53 = arith.constant 0.393469334 : f32
    %94 = vector.broadcast %cst_53 : f32 to vector<8x128xf32>
    %95 = arith.mulf %94, %58 : vector<8x128xf32>
    %96 = arith.addf %93, %95 : vector<8x128xf32>
    %cst_54 = arith.constant 0.000000e+00 : f32
    %97 = vector.broadcast %cst_54 : f32 to vector<8x128xf32>
    %98 = arith.select %79, %97, %96 : vector<8x128xi1>, vector<8x128xf32>
    %99 = arith.index_cast %c2_i32 : i32 to index
    %c0_55 = arith.constant 0 : index
    %c0_56 = arith.constant 0 : index
    %100 = vector.load %arg7[%99, %c0_55, %c0_56] : memref<8x8x128xf32, #tpu.memory_space<vmem>>, vector<1x8x128xf32>
    %101 = vector.shape_cast %100 : vector<1x8x128xf32> to vector<8x128xf32>
    %102 = vector.shape_cast %98 : vector<8x128xf32> to vector<1x8x128xf32>
    tpu.vector_store %arg7[%99, %c0_55, %c0_56], %102 {strides = array<i32>} : memref<8x8x128xf32, #tpu.memory_space<vmem>>, vector<1x8x128xf32>,
    %103 = arith.index_cast %c2_i32 : i32 to index
    %c0_57 = arith.constant 0 : index
    %c0_58 = arith.constant 0 : index
    %104 = vector.load %arg8[%103, %c0_57, %c0_58] : memref<8x8x128xf32, #tpu.memory_space<vmem>>, vector<1x8x128xf32>
    %105 = vector.shape_cast %104 : vector<1x8x128xf32> to vector<8x128xf32>
    %106 = vector.shape_cast %91 : vector<8x128xf32> to vector<1x8x128xf32>
    tpu.vector_store %arg8[%103, %c0_57, %c0_58], %106 {strides = array<i32>} : memref<8x8x128xf32, #tpu.memory_space<vmem>>, vector<1x8x128xf32>,
    %107 = arith.index_cast %c2_i32 : i32 to index
    %c0_59 = arith.constant 0 : index
    %c0_60 = arith.constant 0 : index
    %108 = vector.load %arg9[%107, %c0_59, %c0_60] : memref<8x8x128xbf16, #tpu.memory_space<vmem>>, vector<1x8x128xbf16>
    %109 = vector.shape_cast %108 : vector<1x8x128xbf16> to vector<8x128xbf16>
    %110 = vector.shape_cast %82 : vector<8x128xbf16> to vector<1x8x128xbf16>
    tpu.vector_store %arg9[%107, %c0_59, %c0_60], %110 {strides = array<i32>} : memref<8x8x128xbf16, #tpu.memory_space<vmem>>, vector<1x8x128xbf16>,
    %c3_i32 = arith.constant 3 : i32
    %cst_61 = arith.constant 1.000000e+00 : f32
    %111 = vector.broadcast %cst_61 : f32 to vector<8x128xf32>
    %112 = arith.cmpf oge, %98, %111 : vector<8x128xf32>
    %113 = arith.extui %112 : vector<8x128xi1> to vector<8x128xi32>
    %114 = arith.sitofp %113 : vector<8x128xi32> to vector<8x128xf32>
    %115 = arith.truncf %114 : vector<8x128xf32> to vector<8x128xbf16>
    %c0_62 = arith.constant 0 : index
    %c0_63 = arith.constant 0 : index
    %116 = vector.load %arg4[%c0_62, %c0_63] : memref<128x128xbf16, #tpu.memory_space<vmem>>, vector<128x128xbf16>
    %cst_64 = arith.constant dense<0.000000e+00> : vector<8x128xf32>
    %117 = tpu.matmul %115, %116, %cst_64 {dimension_numbers = #tpu.dot_dimension_numbers<[1], [0], [0], [1], [0, 0, 1, 1], [], []>} : vector<8x128xbf16>, vector<128x128xbf16>, vector<8x128xf32> -> vector<8x128xf32>
    %cst_65 = arith.constant 0.36787945 : f32
    %118 = vector.broadcast %cst_65 : f32 to vector<8x128xf32>
    %119 = arith.mulf %118, %91 : vector<8x128xf32>
    %120 = arith.index_cast %c3_i32 : i32 to index
    %c0_66 = arith.constant 0 : index
    %c0_67 = arith.constant 0 : index
    %121 = vector.load %arg12[%120, %c0_66, %c0_67] : memref<8x8x128xf32, #tpu.memory_space<vmem>>, vector<1x8x128xf32>
    %122 = vector.shape_cast %121 : vector<1x8x128xf32> to vector<8x128xf32>
    %123 = arith.addf %119, %122 : vector<8x128xf32>
    %124 = arith.addf %123, %117 : vector<8x128xf32>
    %cst_68 = arith.constant 0.606530666 : f32
    %125 = vector.broadcast %cst_68 : f32 to vector<8x128xf32>
    %126 = arith.mulf %125, %98 : vector<8x128xf32>
    %cst_69 = arith.constant 0.393469334 : f32
    %127 = vector.broadcast %cst_69 : f32 to vector<8x128xf32>
    %128 = arith.mulf %127, %91 : vector<8x128xf32>
    %129 = arith.addf %126, %128 : vector<8x128xf32>
    %cst_70 = arith.constant 0.000000e+00 : f32
    %130 = vector.broadcast %cst_70 : f32 to vector<8x128xf32>
    %131 = arith.select %112, %130, %129 : vector<8x128xi1>, vector<8x128xf32>
    %132 = arith.index_cast %c3_i32 : i32 to index
    %c0_71 = arith.constant 0 : index
    %c0_72 = arith.constant 0 : index
    %133 = vector.load %arg7[%132, %c0_71, %c0_72] : memref<8x8x128xf32, #tpu.memory_space<vmem>>, vector<1x8x128xf32>
    %134 = vector.shape_cast %133 : vector<1x8x128xf32> to vector<8x128xf32>
    %135 = vector.shape_cast %131 : vector<8x128xf32> to vector<1x8x128xf32>
    tpu.vector_store %arg7[%132, %c0_71, %c0_72], %135 {strides = array<i32>} : memref<8x8x128xf32, #tpu.memory_space<vmem>>, vector<1x8x128xf32>,
    %136 = arith.index_cast %c3_i32 : i32 to index
    %c0_73 = arith.constant 0 : index
    %c0_74 = arith.constant 0 : index
    %137 = vector.load %arg8[%136, %c0_73, %c0_74] : memref<8x8x128xf32, #tpu.memory_space<vmem>>, vector<1x8x128xf32>
    %138 = vector.shape_cast %137 : vector<1x8x128xf32> to vector<8x128xf32>
    %139 = vector.shape_cast %124 : vector<8x128xf32> to vector<1x8x128xf32>
    tpu.vector_store %arg8[%136, %c0_73, %c0_74], %139 {strides = array<i32>} : memref<8x8x128xf32, #tpu.memory_space<vmem>>, vector<1x8x128xf32>,
    %140 = arith.index_cast %c3_i32 : i32 to index
    %c0_75 = arith.constant 0 : index
    %c0_76 = arith.constant 0 : index
    %141 = vector.load %arg9[%140, %c0_75, %c0_76] : memref<8x8x128xbf16, #tpu.memory_space<vmem>>, vector<1x8x128xbf16>
    %142 = vector.shape_cast %141 : vector<1x8x128xbf16> to vector<8x128xbf16>
    %143 = vector.shape_cast %115 : vector<8x128xbf16> to vector<1x8x128xbf16>
    tpu.vector_store %arg9[%140, %c0_75, %c0_76], %143 {strides = array<i32>} : memref<8x8x128xbf16, #tpu.memory_space<vmem>>, vector<1x8x128xbf16>,
    %c4_i32 = arith.constant 4 : i32
    %cst_77 = arith.constant 1.000000e+00 : f32
    %144 = vector.broadcast %cst_77 : f32 to vector<8x128xf32>
    %145 = arith.cmpf oge, %131, %144 : vector<8x128xf32>
    %146 = arith.extui %145 : vector<8x128xi1> to vector<8x128xi32>
    %147 = arith.sitofp %146 : vector<8x128xi32> to vector<8x128xf32>
    %148 = arith.truncf %147 : vector<8x128xf32> to vector<8x128xbf16>
    %c0_78 = arith.constant 0 : index
    %c0_79 = arith.constant 0 : index
    %149 = vector.load %arg4[%c0_78, %c0_79] : memref<128x128xbf16, #tpu.memory_space<vmem>>, vector<128x128xbf16>
    %cst_80 = arith.constant dense<0.000000e+00> : vector<8x128xf32>
    %150 = tpu.matmul %148, %149, %cst_80 {dimension_numbers = #tpu.dot_dimension_numbers<[1], [0], [0], [1], [0, 0, 1, 1], [], []>} : vector<8x128xbf16>, vector<128x128xbf16>, vector<8x128xf32> -> vector<8x128xf32>
    %cst_81 = arith.constant 0.36787945 : f32
    %151 = vector.broadcast %cst_81 : f32 to vector<8x128xf32>
    %152 = arith.mulf %151, %124 : vector<8x128xf32>
    %153 = arith.index_cast %c4_i32 : i32 to index
    %c0_82 = arith.constant 0 : index
    %c0_83 = arith.constant 0 : index
    %154 = vector.load %arg12[%153, %c0_82, %c0_83] : memref<8x8x128xf32, #tpu.memory_space<vmem>>, vector<1x8x128xf32>
    %155 = vector.shape_cast %154 : vector<1x8x128xf32> to vector<8x128xf32>
    %156 = arith.addf %152, %155 : vector<8x128xf32>
    %157 = arith.addf %156, %150 : vector<8x128xf32>
    %cst_84 = arith.constant 0.606530666 : f32
    %158 = vector.broadcast %cst_84 : f32 to vector<8x128xf32>
    %159 = arith.mulf %158, %131 : vector<8x128xf32>
    %cst_85 = arith.constant 0.393469334 : f32
    %160 = vector.broadcast %cst_85 : f32 to vector<8x128xf32>
    %161 = arith.mulf %160, %124 : vector<8x128xf32>
    %162 = arith.addf %159, %161 : vector<8x128xf32>
    %cst_86 = arith.constant 0.000000e+00 : f32
    %163 = vector.broadcast %cst_86 : f32 to vector<8x128xf32>
    %164 = arith.select %145, %163, %162 : vector<8x128xi1>, vector<8x128xf32>
    %165 = arith.index_cast %c4_i32 : i32 to index
    %c0_87 = arith.constant 0 : index
    %c0_88 = arith.constant 0 : index
    %166 = vector.load %arg7[%165, %c0_87, %c0_88] : memref<8x8x128xf32, #tpu.memory_space<vmem>>, vector<1x8x128xf32>
    %167 = vector.shape_cast %166 : vector<1x8x128xf32> to vector<8x128xf32>
    %168 = vector.shape_cast %164 : vector<8x128xf32> to vector<1x8x128xf32>
    tpu.vector_store %arg7[%165, %c0_87, %c0_88], %168 {strides = array<i32>} : memref<8x8x128xf32, #tpu.memory_space<vmem>>, vector<1x8x128xf32>,
    %169 = arith.index_cast %c4_i32 : i32 to index
    %c0_89 = arith.constant 0 : index
    %c0_90 = arith.constant 0 : index
    %170 = vector.load %arg8[%169, %c0_89, %c0_90] : memref<8x8x128xf32, #tpu.memory_space<vmem>>, vector<1x8x128xf32>
    %171 = vector.shape_cast %170 : vector<1x8x128xf32> to vector<8x128xf32>
    %172 = vector.shape_cast %157 : vector<8x128xf32> to vector<1x8x128xf32>
    tpu.vector_store %arg8[%169, %c0_89, %c0_90], %172 {strides = array<i32>} : memref<8x8x128xf32, #tpu.memory_space<vmem>>, vector<1x8x128xf32>,
    %173 = arith.index_cast %c4_i32 : i32 to index
    %c0_91 = arith.constant 0 : index
    %c0_92 = arith.constant 0 : index
    %174 = vector.load %arg9[%173, %c0_91, %c0_92] : memref<8x8x128xbf16, #tpu.memory_space<vmem>>, vector<1x8x128xbf16>
    %175 = vector.shape_cast %174 : vector<1x8x128xbf16> to vector<8x128xbf16>
    %176 = vector.shape_cast %148 : vector<8x128xbf16> to vector<1x8x128xbf16>
    tpu.vector_store %arg9[%173, %c0_91, %c0_92], %176 {strides = array<i32>} : memref<8x8x128xbf16, #tpu.memory_space<vmem>>, vector<1x8x128xbf16>,
    %c5_i32 = arith.constant 5 : i32
    %cst_93 = arith.constant 1.000000e+00 : f32
    %177 = vector.broadcast %cst_93 : f32 to vector<8x128xf32>
    %178 = arith.cmpf oge, %164, %177 : vector<8x128xf32>
    %179 = arith.extui %178 : vector<8x128xi1> to vector<8x128xi32>
    %180 = arith.sitofp %179 : vector<8x128xi32> to vector<8x128xf32>
    %181 = arith.truncf %180 : vector<8x128xf32> to vector<8x128xbf16>
    %c0_94 = arith.constant 0 : index
    %c0_95 = arith.constant 0 : index
    %182 = vector.load %arg4[%c0_94, %c0_95] : memref<128x128xbf16, #tpu.memory_space<vmem>>, vector<128x128xbf16>
    %cst_96 = arith.constant dense<0.000000e+00> : vector<8x128xf32>
    %183 = tpu.matmul %181, %182, %cst_96 {dimension_numbers = #tpu.dot_dimension_numbers<[1], [0], [0], [1], [0, 0, 1, 1], [], []>} : vector<8x128xbf16>, vector<128x128xbf16>, vector<8x128xf32> -> vector<8x128xf32>
    %cst_97 = arith.constant 0.36787945 : f32
    %184 = vector.broadcast %cst_97 : f32 to vector<8x128xf32>
    %185 = arith.mulf %184, %157 : vector<8x128xf32>
    %186 = arith.index_cast %c5_i32 : i32 to index
    %c0_98 = arith.constant 0 : index
    %c0_99 = arith.constant 0 : index
    %187 = vector.load %arg12[%186, %c0_98, %c0_99] : memref<8x8x128xf32, #tpu.memory_space<vmem>>, vector<1x8x128xf32>
    %188 = vector.shape_cast %187 : vector<1x8x128xf32> to vector<8x128xf32>
    %189 = arith.addf %185, %188 : vector<8x128xf32>
    %190 = arith.addf %189, %183 : vector<8x128xf32>
    %cst_100 = arith.constant 0.606530666 : f32
    %191 = vector.broadcast %cst_100 : f32 to vector<8x128xf32>
    %192 = arith.mulf %191, %164 : vector<8x128xf32>
    %cst_101 = arith.constant 0.393469334 : f32
    %193 = vector.broadcast %cst_101 : f32 to vector<8x128xf32>
    %194 = arith.mulf %193, %157 : vector<8x128xf32>
    %195 = arith.addf %192, %194 : vector<8x128xf32>
    %cst_102 = arith.constant 0.000000e+00 : f32
    %196 = vector.broadcast %cst_102 : f32 to vector<8x128xf32>
    %197 = arith.select %178, %196, %195 : vector<8x128xi1>, vector<8x128xf32>
    %198 = arith.index_cast %c5_i32 : i32 to index
    %c0_103 = arith.constant 0 : index
    %c0_104 = arith.constant 0 : index
    %199 = vector.load %arg7[%198, %c0_103, %c0_104] : memref<8x8x128xf32, #tpu.memory_space<vmem>>, vector<1x8x128xf32>
    %200 = vector.shape_cast %199 : vector<1x8x128xf32> to vector<8x128xf32>
    %201 = vector.shape_cast %197 : vector<8x128xf32> to vector<1x8x128xf32>
    tpu.vector_store %arg7[%198, %c0_103, %c0_104], %201 {strides = array<i32>} : memref<8x8x128xf32, #tpu.memory_space<vmem>>, vector<1x8x128xf32>,
    %202 = arith.index_cast %c5_i32 : i32 to index
    %c0_105 = arith.constant 0 : index
    %c0_106 = arith.constant 0 : index
    %203 = vector.load %arg8[%202, %c0_105, %c0_106] : memref<8x8x128xf32, #tpu.memory_space<vmem>>, vector<1x8x128xf32>
    %204 = vector.shape_cast %203 : vector<1x8x128xf32> to vector<8x128xf32>
    %205 = vector.shape_cast %190 : vector<8x128xf32> to vector<1x8x128xf32>
    tpu.vector_store %arg8[%202, %c0_105, %c0_106], %205 {strides = array<i32>} : memref<8x8x128xf32, #tpu.memory_space<vmem>>, vector<1x8x128xf32>,
    %206 = arith.index_cast %c5_i32 : i32 to index
    %c0_107 = arith.constant 0 : index
    %c0_108 = arith.constant 0 : index
    %207 = vector.load %arg9[%206, %c0_107, %c0_108] : memref<8x8x128xbf16, #tpu.memory_space<vmem>>, vector<1x8x128xbf16>
    %208 = vector.shape_cast %207 : vector<1x8x128xbf16> to vector<8x128xbf16>
    %209 = vector.shape_cast %181 : vector<8x128xbf16> to vector<1x8x128xbf16>
    tpu.vector_store %arg9[%206, %c0_107, %c0_108], %209 {strides = array<i32>} : memref<8x8x128xbf16, #tpu.memory_space<vmem>>, vector<1x8x128xbf16>,
    %c6_i32 = arith.constant 6 : i32
    %cst_109 = arith.constant 1.000000e+00 : f32
    %210 = vector.broadcast %cst_109 : f32 to vector<8x128xf32>
    %211 = arith.cmpf oge, %197, %210 : vector<8x128xf32>
    %212 = arith.extui %211 : vector<8x128xi1> to vector<8x128xi32>
    %213 = arith.sitofp %212 : vector<8x128xi32> to vector<8x128xf32>
    %214 = arith.truncf %213 : vector<8x128xf32> to vector<8x128xbf16>
    %c0_110 = arith.constant 0 : index
    %c0_111 = arith.constant 0 : index
    %215 = vector.load %arg4[%c0_110, %c0_111] : memref<128x128xbf16, #tpu.memory_space<vmem>>, vector<128x128xbf16>
    %cst_112 = arith.constant dense<0.000000e+00> : vector<8x128xf32>
    %216 = tpu.matmul %214, %215, %cst_112 {dimension_numbers = #tpu.dot_dimension_numbers<[1], [0], [0], [1], [0, 0, 1, 1], [], []>} : vector<8x128xbf16>, vector<128x128xbf16>, vector<8x128xf32> -> vector<8x128xf32>
    %cst_113 = arith.constant 0.36787945 : f32
    %217 = vector.broadcast %cst_113 : f32 to vector<8x128xf32>
    %218 = arith.mulf %217, %190 : vector<8x128xf32>
    %219 = arith.index_cast %c6_i32 : i32 to index
    %c0_114 = arith.constant 0 : index
    %c0_115 = arith.constant 0 : index
    %220 = vector.load %arg12[%219, %c0_114, %c0_115] : memref<8x8x128xf32, #tpu.memory_space<vmem>>, vector<1x8x128xf32>
    %221 = vector.shape_cast %220 : vector<1x8x128xf32> to vector<8x128xf32>
    %222 = arith.addf %218, %221 : vector<8x128xf32>
    %223 = arith.addf %222, %216 : vector<8x128xf32>
    %cst_116 = arith.constant 0.606530666 : f32
    %224 = vector.broadcast %cst_116 : f32 to vector<8x128xf32>
    %225 = arith.mulf %224, %197 : vector<8x128xf32>
    %cst_117 = arith.constant 0.393469334 : f32
    %226 = vector.broadcast %cst_117 : f32 to vector<8x128xf32>
    %227 = arith.mulf %226, %190 : vector<8x128xf32>
    %228 = arith.addf %225, %227 : vector<8x128xf32>
    %cst_118 = arith.constant 0.000000e+00 : f32
    %229 = vector.broadcast %cst_118 : f32 to vector<8x128xf32>
    %230 = arith.select %211, %229, %228 : vector<8x128xi1>, vector<8x128xf32>
    %231 = arith.index_cast %c6_i32 : i32 to index
    %c0_119 = arith.constant 0 : index
    %c0_120 = arith.constant 0 : index
    %232 = vector.load %arg7[%231, %c0_119, %c0_120] : memref<8x8x128xf32, #tpu.memory_space<vmem>>, vector<1x8x128xf32>
    %233 = vector.shape_cast %232 : vector<1x8x128xf32> to vector<8x128xf32>
    %234 = vector.shape_cast %230 : vector<8x128xf32> to vector<1x8x128xf32>
    tpu.vector_store %arg7[%231, %c0_119, %c0_120], %234 {strides = array<i32>} : memref<8x8x128xf32, #tpu.memory_space<vmem>>, vector<1x8x128xf32>,
    %235 = arith.index_cast %c6_i32 : i32 to index
    %c0_121 = arith.constant 0 : index
    %c0_122 = arith.constant 0 : index
    %236 = vector.load %arg8[%235, %c0_121, %c0_122] : memref<8x8x128xf32, #tpu.memory_space<vmem>>, vector<1x8x128xf32>
    %237 = vector.shape_cast %236 : vector<1x8x128xf32> to vector<8x128xf32>
    %238 = vector.shape_cast %223 : vector<8x128xf32> to vector<1x8x128xf32>
    tpu.vector_store %arg8[%235, %c0_121, %c0_122], %238 {strides = array<i32>} : memref<8x8x128xf32, #tpu.memory_space<vmem>>, vector<1x8x128xf32>,
    %239 = arith.index_cast %c6_i32 : i32 to index
    %c0_123 = arith.constant 0 : index
    %c0_124 = arith.constant 0 : index
    %240 = vector.load %arg9[%239, %c0_123, %c0_124] : memref<8x8x128xbf16, #tpu.memory_space<vmem>>, vector<1x8x128xbf16>
    %241 = vector.shape_cast %240 : vector<1x8x128xbf16> to vector<8x128xbf16>
    %242 = vector.shape_cast %214 : vector<8x128xbf16> to vector<1x8x128xbf16>
    tpu.vector_store %arg9[%239, %c0_123, %c0_124], %242 {strides = array<i32>} : memref<8x8x128xbf16, #tpu.memory_space<vmem>>, vector<1x8x128xbf16>,
    %c7_i32 = arith.constant 7 : i32
    %cst_125 = arith.constant 1.000000e+00 : f32
    %243 = vector.broadcast %cst_125 : f32 to vector<8x128xf32>
    %244 = arith.cmpf oge, %230, %243 : vector<8x128xf32>
    %245 = arith.extui %244 : vector<8x128xi1> to vector<8x128xi32>
    %246 = arith.sitofp %245 : vector<8x128xi32> to vector<8x128xf32>
    %247 = arith.truncf %246 : vector<8x128xf32> to vector<8x128xbf16>
    %c0_126 = arith.constant 0 : index
    %c0_127 = arith.constant 0 : index
    %248 = vector.load %arg4[%c0_126, %c0_127] : memref<128x128xbf16, #tpu.memory_space<vmem>>, vector<128x128xbf16>
    %cst_128 = arith.constant dense<0.000000e+00> : vector<8x128xf32>
    %249 = tpu.matmul %247, %248, %cst_128 {dimension_numbers = #tpu.dot_dimension_numbers<[1], [0], [0], [1], [0, 0, 1, 1], [], []>} : vector<8x128xbf16>, vector<128x128xbf16>, vector<8x128xf32> -> vector<8x128xf32>
    %cst_129 = arith.constant 0.36787945 : f32
    %250 = vector.broadcast %cst_129 : f32 to vector<8x128xf32>
    %251 = arith.mulf %250, %223 : vector<8x128xf32>
    %252 = arith.index_cast %c7_i32 : i32 to index
    %c0_130 = arith.constant 0 : index
    %c0_131 = arith.constant 0 : index
    %253 = vector.load %arg12[%252, %c0_130, %c0_131] : memref<8x8x128xf32, #tpu.memory_space<vmem>>, vector<1x8x128xf32>
    %254 = vector.shape_cast %253 : vector<1x8x128xf32> to vector<8x128xf32>
    %255 = arith.addf %251, %254 : vector<8x128xf32>
    %256 = arith.addf %255, %249 : vector<8x128xf32>
    %cst_132 = arith.constant 0.606530666 : f32
    %257 = vector.broadcast %cst_132 : f32 to vector<8x128xf32>
    %258 = arith.mulf %257, %230 : vector<8x128xf32>
    %cst_133 = arith.constant 0.393469334 : f32
    %259 = vector.broadcast %cst_133 : f32 to vector<8x128xf32>
    %260 = arith.mulf %259, %223 : vector<8x128xf32>
    %261 = arith.addf %258, %260 : vector<8x128xf32>
    %cst_134 = arith.constant 0.000000e+00 : f32
    %262 = vector.broadcast %cst_134 : f32 to vector<8x128xf32>
    %263 = arith.select %244, %262, %261 : vector<8x128xi1>, vector<8x128xf32>
    %264 = arith.index_cast %c7_i32 : i32 to index
    %c0_135 = arith.constant 0 : index
    %c0_136 = arith.constant 0 : index
    %265 = vector.load %arg7[%264, %c0_135, %c0_136] : memref<8x8x128xf32, #tpu.memory_space<vmem>>, vector<1x8x128xf32>
    %266 = vector.shape_cast %265 : vector<1x8x128xf32> to vector<8x128xf32>
    %267 = vector.shape_cast %263 : vector<8x128xf32> to vector<1x8x128xf32>
    tpu.vector_store %arg7[%264, %c0_135, %c0_136], %267 {strides = array<i32>} : memref<8x8x128xf32, #tpu.memory_space<vmem>>, vector<1x8x128xf32>,
    %268 = arith.index_cast %c7_i32 : i32 to index
    %c0_137 = arith.constant 0 : index
    %c0_138 = arith.constant 0 : index
    %269 = vector.load %arg8[%268, %c0_137, %c0_138] : memref<8x8x128xf32, #tpu.memory_space<vmem>>, vector<1x8x128xf32>
    %270 = vector.shape_cast %269 : vector<1x8x128xf32> to vector<8x128xf32>
    %271 = vector.shape_cast %256 : vector<8x128xf32> to vector<1x8x128xf32>
    tpu.vector_store %arg8[%268, %c0_137, %c0_138], %271 {strides = array<i32>} : memref<8x8x128xf32, #tpu.memory_space<vmem>>, vector<1x8x128xf32>,
    %272 = arith.index_cast %c7_i32 : i32 to index
    %c0_139 = arith.constant 0 : index
    %c0_140 = arith.constant 0 : index
    %273 = vector.load %arg9[%272, %c0_139, %c0_140] : memref<8x8x128xbf16, #tpu.memory_space<vmem>>, vector<1x8x128xbf16>
    %274 = vector.shape_cast %273 : vector<1x8x128xbf16> to vector<8x128xbf16>
    %275 = vector.shape_cast %247 : vector<8x128xbf16> to vector<1x8x128xbf16>
    tpu.vector_store %arg9[%272, %c0_139, %c0_140], %275 {strides = array<i32>} : memref<8x8x128xbf16, #tpu.memory_space<vmem>>, vector<1x8x128xbf16>,
    %c8_i32 = arith.constant 8 : i32
    %c0_141 = arith.constant 0 : index
    %c0_142 = arith.constant 0 : index
    %276 = vector.load %arg10[%c0_141, %c0_142] : memref<8x128xf32, #tpu.memory_space<vmem>>, vector<8x128xf32>
    tpu.vector_store %arg10[%c0_141, %c0_142], %263 {strides = array<i32>} : memref<8x128xf32, #tpu.memory_space<vmem>>, vector<8x128xf32>,
    %c0_143 = arith.constant 0 : index
    %c0_144 = arith.constant 0 : index
    %277 = vector.load %arg11[%c0_143, %c0_144] : memref<8x128xf32, #tpu.memory_space<vmem>>, vector<8x128xf32>
    tpu.vector_store %arg11[%c0_143, %c0_144], %256 {strides = array<i32>} : memref<8x128xf32, #tpu.memory_space<vmem>>, vector<8x128xf32>,
    return
  }
  func.func @transform_0(%arg0: i32, %arg1: i32) -> (i32, i32, i32) {
    %c0_i32 = arith.constant 0 : i32
    %c0_i32_0 = arith.constant 0 : i32
    return %arg1, %arg0, %c0_i32 : i32, i32, i32
  }
  func.func @transform_1(%arg0: i32, %arg1: i32) -> (i32, i32) {
    %c0_i32 = arith.constant 0 : i32
    %c0_i32_0 = arith.constant 0 : i32
    %c0_i32_1 = arith.constant 0 : i32
    return %c0_i32, %c0_i32_0 : i32, i32
  }
  func.func @transform_2(%arg0: i32, %arg1: i32) -> (i32, i32) {
    %c0_i32 = arith.constant 0 : i32
    %c0_i32_0 = arith.constant 0 : i32
    %c0_i32_1 = arith.constant 0 : i32
    return %c0_i32, %c0_i32_0 : i32, i32
  }
  func.func @transform_3(%arg0: i32, %arg1: i32) -> (i32, i32) {
    %c0_i32 = arith.constant 0 : i32
    %c0_i32_0 = arith.constant 0 : i32
    return %arg0, %c0_i32 : i32, i32
  }
  func.func @transform_4(%arg0: i32, %arg1: i32) -> (i32, i32) {
    %c0_i32 = arith.constant 0 : i32
    %c0_i32_0 = arith.constant 0 : i32
    return %arg0, %c0_i32 : i32, i32
  }
  func.func @transform_5(%arg0: i32, %arg1: i32) -> (i32, i32, i32) {
    %c0_i32 = arith.constant 0 : i32
    %c0_i32_0 = arith.constant 0 : i32
    return %arg1, %arg0, %c0_i32 : i32, i32, i32
  }
  func.func @transform_6(%arg0: i32, %arg1: i32) -> (i32, i32, i32) {
    %c0_i32 = arith.constant 0 : i32
    %c0_i32_0 = arith.constant 0 : i32
    return %arg1, %arg0, %c0_i32 : i32, i32, i32
  }
  func.func @transform_7(%arg0: i32, %arg1: i32) -> (i32, i32, i32) {
    %c0_i32 = arith.constant 0 : i32
    %c0_i32_0 = arith.constant 0 : i32
    return %arg1, %arg0, %c0_i32 : i32, i32, i32
  }
}

</mosaic_0001>

<llo_original>
// kernel: snn_layer_forward.1
$region0: #{snn_layer_forward.1}
  #allocation0 [shape = 'u32[]', space=smem, size = 0x4, offset = 0x4, fixed_abs, tag = 'smem constant byte address 0x4 - core index']
  #allocation1 [shape = 'u32[144,128]{1,0:T(1,128)}', space=vmem, size = 0x12000, scoped, tag = 'internal scratch']
  #allocation2 [shape = 'f32[8,128]{1,0:T(8,128)}', space=vmem, size = 0x1000, scoped, tag = 'scratch operand']
  #allocation3 [shape = 'f32[8,128]{1,0:T(8,128)}', space=vmem, size = 0x1000, scoped, tag = 'scratch operand']
  #allocation4 [shape = 'f32[8,8,128]{2,1,0:T(8,128)}', space=vmem, size = 0x8000, scoped, tag = 'scratch operand']
  %s0 = inlined_call_operand.vmem [shape: f32[8,8,128], index: 0, kind: input, shape index: {}]
  %s1 = inlined_call_operand.vmem [shape: bf16[128,128], index: 1, kind: input, shape index: {}]
  %s2 = inlined_call_operand.vmem [shape: bf16[128,128], index: 2, kind: input, shape index: {}]
  %s3 = inlined_call_operand.vmem [shape: f32[8,128], index: 3, kind: input, shape index: {}]
  %s4 = inlined_call_operand.vmem [shape: f32[8,128], index: 4, kind: input, shape index: {}]
  %s5 = inlined_call_operand.vmem [shape: f32[8,8,128], index: 5, kind: output, shape index: {0}]
  %s6 = inlined_call_operand.vmem [shape: f32[8,8,128], index: 6, kind: output, shape index: {1}]
  %s7 = inlined_call_operand.vmem [shape: bf16[8,8,128], index: 7, kind: output, shape index: {2}]
  %8 = xla_tuple %s5, %s6, %s7
  %s9 = sld [smem:[#allocation0]]
  $region50: #{snn_layer_forward.1} parent=0
    _
  %s11 = ssub.s32 1, %s9
  %s12 = scalar_select 0, %s11, %s9
  // Predicated region
  $region2: #{snn_layer_forward.1} parent=0 // pred_check
    _
  $region3: #{snn_layer_forward.1} parent=0 // pred_check_branch
    %14 = sbr.rel (0) target = $region5
  $region4: #{snn_layer_forward.1} parent=0 // pred_region
    _
  $region5: #{snn_layer_forward.1} parent=0 // pred_fallthru
    _
  // Predicated region
  $region6: #{snn_layer_forward.1} parent=0 // pred_check
    _
  $region7: #{snn_layer_forward.1} parent=0 // pred_check_branch
    %16 = sbr.rel (0) target = $region9
  $region8: #{snn_layer_forward.1} parent=0 // pred_region
    _
  $region9: #{snn_layer_forward.1} parent=0 // pred_fallthru
    _
  // Predicated region
  $region10: #{snn_layer_forward.1} parent=0 // pred_check
    _
  $region11: #{snn_layer_forward.1} parent=0 // pred_check_branch
    %18 = sbr.rel (0) target = $region13
  $region12: #{snn_layer_forward.1} parent=0 // pred_region
    _
  $region13: #{snn_layer_forward.1} parent=0 // pred_fallthru
    _
  // Predicated region
  $region14: #{snn_layer_forward.1} parent=0 // pred_check
    _
  $region15: #{snn_layer_forward.1} parent=0 // pred_check_branch
    %20 = sbr.rel (0) target = $region17
  $region16: #{snn_layer_forward.1} parent=0 // pred_region
    _
  $region17: #{snn_layer_forward.1} parent=0 // pred_fallthru
    _
  // Predicated region
  $region18: #{snn_layer_forward.1} parent=0 // pred_check
    _
  $region19: #{snn_layer_forward.1} parent=0 // pred_check_branch
    %22 = sbr.rel (0) target = $region21
  $region20: #{snn_layer_forward.1} parent=0 // pred_region
    _
  $region21: #{snn_layer_forward.1} parent=0 // pred_fallthru
    _
  %p24 = scmp.eq.s32.totalorder 0, 0
  // Predicated region
  $region22: #{snn_layer_forward.1} parent=0 // pred_check
    %p25 = pneg %p24
  $region23: #{snn_layer_forward.1} parent=0 // pred_check_branch
    %27 = sbr.rel (%p25) target = $region25
  $region24: #{snn_layer_forward.1} parent=0 // pred_region
    %v28 = vld [vmem:[%s3] sm:$0xff]
    %29 = vst [vmem:[#allocation2] sm:$0xff] %v28
    %v30 = vld [vmem:[%s4] sm:$0xff]
    %31 = vst [vmem:[#allocation3] sm:$0xff] %v30
  $region25: #{snn_layer_forward.1} parent=0 // pred_fallthru
    _
  %v32 = vld [vmem:[%s0] sm:$0xff]
  %v33 = vld [vmem:[%s0 + $0x8] sm:$0xff]
  %v34 = vld [vmem:[%s0 + $0x10] sm:$0xff]
  %v35 = vld [vmem:[%s0 + $0x18] sm:$0xff]
  %v36 = vld [vmem:[%s0 + $0x20] sm:$0xff]
  %v37 = vld [vmem:[%s0 + $0x28] sm:$0xff]
  %v38 = vld [vmem:[%s0 + $0x30] sm:$0xff]
  %v39 = vld [vmem:[%s0 + $0x38] sm:$0xff]
  %v40 = vpack.c.bf16 %v32, %v32
  %v41 = vpack.c.bf16 %v33, %v33
  %v42 = vpack.c.bf16 %v34, %v34
  %v43 = vpack.c.bf16 %v35, %v35
  %v44 = vpack.c.bf16 %v36, %v36
  %v45 = vpack.c.bf16 %v37, %v37
  %v46 = vpack.c.bf16 %v38, %v38
  %v47 = vpack.c.bf16 %v39, %v39
  %v48 = vld [vmem:[%s1] sm:$0xf]
  %v49 = vld [vmem:[%s1 + $0x4] sm:$0xf]
  %v50 = vld [vmem:[%s1 + $0x8] sm:$0xf]
  %v51 = vld [vmem:[%s1 + $0xc] sm:$0xf]
  %v52 = vld [vmem:[%s1 + $0x10] sm:$0xf]
  %v53 = vld [vmem:[%s1 + $0x14] sm:$0xf]
  %v54 = vld [vmem:[%s1 + $0x18] sm:$0xf]
  %v55 = vld [vmem:[%s1 + $0x1c] sm:$0xf]
  %v56 = vld [vmem:[%s1 + $0x20] sm:$0xf]
  %v57 = vld [vmem:[%s1 + $0x24] sm:$0xf]
  %v58 = vld [vmem:[%s1 + $0x28] sm:$0xf]
  %v59 = vld [vmem:[%s1 + $0x2c] sm:$0xf]
  %v60 = vld [vmem:[%s1 + $0x30] sm:$0xf]
  %v61 = vld [vmem:[%s1 + $0x34] sm:$0xf]
  %v62 = vld [vmem:[%s1 + $0x38] sm:$0xf]
  %v63 = vld [vmem:[%s1 + $0x3c] sm:$0xf]
  %v72 = vunpack.c.l.b16 %v40
  %v73 = vunpack.c.l.b16 %v41
  %v74 = vunpack.c.l.b16 %v42
  %v75 = vunpack.c.l.b16 %v43
  %v76 = vunpack.c.l.b16 %v44
  %v77 = vunpack.c.l.b16 %v45
  %v78 = vunpack.c.l.b16 %v46
  %v79 = vunpack.c.l.b16 %v47
  %v80 = vpack.c.b16 %v73, %v72
  %v81 = vpack.c.b16 %v75, %v74
  %v82 = vpack.c.b16 %v77, %v76
  %v83 = vpack.c.b16 %v79, %v78
  %v104 = vunpack.c.l.b16 %v48
  %v105 = vunpack.c.l.b16 %v49
  %v106 = vunpack.c.l.b16 %v50
  %v107 = vunpack.c.l.b16 %v51
  %v108 = vunpack.c.l.b16 %v52
  %v109 = vunpack.c.l.b16 %v53
  %v110 = vunpack.c.l.b16 %v54
  %v111 = vunpack.c.l.b16 %v55
  %v112 = vunpack.c.l.b16 %v56
  %v113 = vunpack.c.l.b16 %v57
  %v114 = vunpack.c.l.b16 %v58
  %v115 = vunpack.c.l.b16 %v59
  %v116 = vunpack.c.l.b16 %v60
  %v117 = vunpack.c.l.b16 %v61
  %v118 = vunpack.c.l.b16 %v62
  %v119 = vunpack.c.l.b16 %v63
  %v120 = vpack.c.b16 %v105, %v104
  %v121 = vpack.c.b16 %v107, %v106
  %v122 = vpack.c.b16 %v109, %v108
  %v123 = vpack.c.b16 %v111, %v110
  %v124 = vpack.c.b16 %v113, %v112
  %v125 = vpack.c.b16 %v115, %v114
  %v126 = vpack.c.b16 %v117, %v116
  %v127 = vpack.c.b16 %v119, %v118
  %136 = vmatprep.subr.bf16.mxu0 0
  %137 = vmatpush1.bf16.msra.mxu0 %v120
  %138 = vmatprep.subr.bf16.mxu0 0
  %139 = vmatpush1.bf16.msra.mxu0 %v121
  %140 = vmatprep.subr.bf16.mxu0 0
  %141 = vmatpush1.bf16.msra.mxu0 %v122
  %142 = vmatprep.subr.bf16.mxu0 0
  %143 = vmatpush1.bf16.msra.mxu0 %v123
  %144 = vmatprep.subr.bf16.mxu0 0
  %145 = vmatpush1.bf16.msra.mxu0 %v124
  %146 = vmatprep.subr.bf16.mxu0 0
  %147 = vmatpush1.bf16.msra.mxu0 %v125
  %148 = vmatprep.subr.bf16.mxu0 0
  %149 = vmatpush1.bf16.msra.mxu0 %v126
  %150 = vmatprep.subr.bf16.mxu0 0
  %151 = vmatpush1.bf16.msra.mxu0 %v127
  %152 = vmatprep.subr.bf16.mxu0 0
  %153 = vmatpush1.bf16.msra.mxu0 0
  %154 = vmatprep.subr.bf16.mxu0 0
  %155 = vmatpush1.bf16.msra.mxu0 0
  %156 = vmatprep.subr.bf16.mxu0 0
  %157 = vmatpush1.bf16.msra.mxu0 0
  %158 = vmatprep.subr.bf16.mxu0 0
  %159 = vmatpush1.bf16.msra.mxu0 0
  %160 = vmatprep.subr.bf16.mxu0 0
  %161 = vmatpush1.bf16.msra.mxu0 0
  %162 = vmatprep.subr.bf16.mxu0 0
  %163 = vmatpush1.bf16.msra.mxu0 0
  %164 = vmatprep.subr.bf16.mxu0 0
  %165 = vmatpush1.bf16.msra.mxu0 0
  %166 = vmatprep.subr.bf16.mxu0 0
  %167 = vmatpush1.bf16.msra.mxu0 0
  %168 = vmatprep.mubr.bf16.mxu0 0
  %169 = vmatmul.mubr.bf16.gmra.mrb[0].mxu0 %v80
  %v170 = vpop.f32.mrb[0].mxu0
  %v171 = vadd.f32 0.0, %v170
  %v172 = vpop.f32.mrb[0].mxu0
  %v173 = vpop.f32.mrb[0].mxu0
  %v174 = vadd.f32 0.0, %v173
  %v175 = vpop.f32.mrb[0].mxu0
  %176 = vmatprep.mubr.bf16.mxu0 0
  %177 = vmatmul.mubr.bf16.gmra.mrb[0].mxu0 %v81
  %v178 = vpop.f32.mrb[0].mxu0
  %v179 = vadd.f32 0.0, %v178
  %v180 = vpop.f32.mrb[0].mxu0
  %v181 = vpop.f32.mrb[0].mxu0
  %v182 = vadd.f32 0.0, %v181
  %v183 = vpop.f32.mrb[0].mxu0
  %184 = vmatprep.mubr.bf16.mxu0 0
  %185 = vmatmul.mubr.bf16.gmra.mrb[0].mxu0 %v82
  %v186 = vpop.f32.mrb[0].mxu0
  %v187 = vadd.f32 0.0, %v186
  %v188 = vpop.f32.mrb[0].mxu0
  %v189 = vpop.f32.mrb[0].mxu0
  %v190 = vadd.f32 0.0, %v189
  %v191 = vpop.f32.mrb[0].mxu0
  %192 = vmatprep.mubr.bf16.mxu0 0
  %193 = vmatmul.mubr.bf16.gmra.mrb[0].mxu0 %v83
  %v194 = vpop.f32.mrb[0].mxu0
  %v195 = vadd.f32 0.0, %v194
  %v196 = vpop.f32.mrb[0].mxu0
  %v197 = vpop.f32.mrb[0].mxu0
  %v198 = vadd.f32 0.0, %v197
  %v199 = vpop.f32.mrb[0].mxu0
  %200 = vdwg.mxu0
  %201 = vst [vmem:[#allocation4] sm:$0xff] %v171
  %202 = vst [vmem:[#allocation4 + $0x8] sm:$0xff] %v174
  %203 = vst [vmem:[#allocation4 + $0x10] sm:$0xff] %v179
  %204 = vst [vmem:[#allocation4 + $0x18] sm:$0xff] %v182
  %205 = vst [vmem:[#allocation4 + $0x20] sm:$0xff] %v187
  %206 = vst [vmem:[#allocation4 + $0x28] sm:$0xff] %v190
  %207 = vst [vmem:[#allocation4 + $0x30] sm:$0xff] %v195
  %208 = vst [vmem:[#allocation4 + $0x38] sm:$0xff] %v198
  %v209 = vld [vmem:[#allocation2] sm:$0xff]
  %v210 = vld [vmem:[#allocation3] sm:$0xff]
  %vm211 = vcmp.ge.f32.partialorder %v209, 1.0
  %v212 = vsel %vm211, 1, 0
  %v213 = vcvt.s32.f32 %v212
  %v214 = vpack.c.bf16 %v213, %v213
  %v215 = vld [vmem:[%s2] sm:$0xf]
  %v216 = vld [vmem:[%s2 + $0x4] sm:$0xf]
  %v217 = vld [vmem:[%s2 + $0x8] sm:$0xf]
  %v218 = vld [vmem:[%s2 + $0xc] sm:$0xf]
  %v219 = vld [vmem:[%s2 + $0x10] sm:$0xf]
  %v220 = vld [vmem:[%s2 + $0x14] sm:$0xf]
  %v221 = vld [vmem:[%s2 + $0x18] sm:$0xf]
  %v222 = vld [vmem:[%s2 + $0x1c] sm:$0xf]
  %v223 = vld [vmem:[%s2 + $0x20] sm:$0xf]
  %v224 = vld [vmem:[%s2 + $0x24] sm:$0xf]
  %v225 = vld [vmem:[%s2 + $0x28] sm:$0xf]
  %v226 = vld [vmem:[%s2 + $0x2c] sm:$0xf]
  %v227 = vld [vmem:[%s2 + $0x30] sm:$0xf]
  %v228 = vld [vmem:[%s2 + $0x34] sm:$0xf]
  %v229 = vld [vmem:[%s2 + $0x38] sm:$0xf]
  %v230 = vld [vmem:[%s2 + $0x3c] sm:$0xf]
  %v247 = vunpack.c.l.b16 %v215
  %v248 = vunpack.c.l.b16 %v216
  %v249 = vunpack.c.l.b16 %v217
  %v250 = vunpack.c.l.b16 %v218
  %v251 = vunpack.c.l.b16 %v219
  %v252 = vunpack.c.l.b16 %v220
  %v253 = vunpack.c.l.b16 %v221
  %v254 = vunpack.c.l.b16 %v222
  %v255 = vunpack.c.l.b16 %v223
  %v256 = vunpack.c.l.b16 %v224
  %v257 = vunpack.c.l.b16 %v225
  %v258 = vunpack.c.l.b16 %v226
  %v259 = vunpack.c.l.b16 %v227
  %v260 = vunpack.c.l.b16 %v228
  %v261 = vunpack.c.l.b16 %v229
  %v262 = vunpack.c.l.b16 %v230
  %v263 = vpack.c.b16 %v248, %v247
  %v264 = vpack.c.b16 %v250, %v249
  %v265 = vpack.c.b16 %v252, %v251
  %v266 = vpack.c.b16 %v254, %v253
  %v267 = vpack.c.b16 %v256, %v255
  %v268 = vpack.c.b16 %v258, %v257
  %v269 = vpack.c.b16 %v260, %v259
  %v270 = vpack.c.b16 %v262, %v261
  %279 = vmatprep.subr.bf16.mxu0 0
  %280 = vmatpush1.bf16.msra.mxu0 %v263
  %281 = vmatprep.subr.bf16.mxu0 0
  %282 = vmatpush1.bf16.msra.mxu0 %v264
  %283 = vmatprep.subr.bf16.mxu0 0
  %284 = vmatpush1.bf16.msra.mxu0 %v265
  %285 = vmatprep.subr.bf16.mxu0 0
  %286 = vmatpush1.bf16.msra.mxu0 %v266
  %287 = vmatprep.subr.bf16.mxu0 0
  %288 = vmatpush1.bf16.msra.mxu0 %v267
  %289 = vmatprep.subr.bf16.mxu0 0
  %290 = vmatpush1.bf16.msra.mxu0 %v268
  %291 = vmatprep.subr.bf16.mxu0 0
  %292 = vmatpush1.bf16.msra.mxu0 %v269
  %293 = vmatprep.subr.bf16.mxu0 0
  %294 = vmatpush1.bf16.msra.mxu0 %v270
  %295 = vmatprep.subr.bf16.mxu0 0
  %296 = vmatpush1.bf16.msra.mxu0 0
  %297 = vmatprep.subr.bf16.mxu0 0
  %298 = vmatpush1.bf16.msra.mxu0 0
  %299 = vmatprep.subr.bf16.mxu0 0
  %300 = vmatpush1.bf16.msra.mxu0 0
  %301 = vmatprep.subr.bf16.mxu0 0
  %302 = vmatpush1.bf16.msra.mxu0 0
  %303 = vmatprep.subr.bf16.mxu0 0
  %304 = vmatpush1.bf16.msra.mxu0 0
  %305 = vmatprep.subr.bf16.mxu0 0
  %306 = vmatpush1.bf16.msra.mxu0 0
  %307 = vmatprep.subr.bf16.mxu0 0
  %308 = vmatpush1.bf16.msra.mxu0 0
  %309 = vmatprep.subr.bf16.mxu0 0
  %310 = vmatpush1.bf16.msra.mxu0 0
  %311 = vmatprep.mubr.bf16.mxu0 0
  %312 = vmatmul.mubr.bf16.gmra.mrb[0].mxu0 %v214
  %v313 = vpop.f32.mrb[0].mxu0
  %v314 = vadd.f32 0.0, %v313
  %v315 = vpop.f32.mrb[0].mxu0
  %v316 = vpop.f32.mrb[0].mxu0
  %v317 = vpop.f32.mrb[0].mxu0
  %318 = vdwg.mxu0
  %v319 = vmul.f32 %v210, 0.36787945
  %v320 = vld [vmem:[#allocation4] sm:$0xff]
  %v321 = vadd.f32 %v319, %v320
  %v322 = vadd.f32 %v321, %v314
  %v323 = vmul.f32 %v209, 0.60653067
  %v324 = vmul.f32 %v210, 0.39346933
  %v325 = vadd.f32 %v323, %v324
  %v326 = vsel %vm211, 0.0, %v325
  %327 = vst [vmem:[%s5] sm:$0xff] %v326
  %328 = vst [vmem:[%s6] sm:$0xff] %v322
  %329 = vst [vmem:[%s7] sm:$0xf] %v214
  %vm330 = vcmp.ge.f32.partialorder %v326, 1.0
  %v331 = vsel %vm330, 1, 0
  %v332 = vcvt.s32.f32 %v331
  %v333 = vpack.c.bf16 %v332, %v332
  %v334 = vld [vmem:[%s2] sm:$0xf]
  %v335 = vld [vmem:[%s2 + $0x4] sm:$0xf]
  %v336 = vld [vmem:[%s2 + $0x8] sm:$0xf]
  %v337 = vld [vmem:[%s2 + $0xc] sm:$0xf]
  %v338 = vld [vmem:[%s2 + $0x10] sm:$0xf]
  %v339 = vld [vmem:[%s2 + $0x14] sm:$0xf]
  %v340 = vld [vmem:[%s2 + $0x18] sm:$0xf]
  %v341 = vld [vmem:[%s2 + $0x1c] sm:$0xf]
  %v342 = vld [vmem:[%s2 + $0x20] sm:$0xf]
  %v343 = vld [vmem:[%s2 + $0x24] sm:$0xf]
  %v344 = vld [vmem:[%s2 + $0x28] sm:$0xf]
  %v345 = vld [vmem:[%s2 + $0x2c] sm:$0xf]
  %v346 = vld [vmem:[%s2 + $0x30] sm:$0xf]
  %v347 = vld [vmem:[%s2 + $0x34] sm:$0xf]
  %v348 = vld [vmem:[%s2 + $0x38] sm:$0xf]
  %v349 = vld [vmem:[%s2 + $0x3c] sm:$0xf]
  %v366 = vunpack.c.l.b16 %v334
  %v367 = vunpack.c.l.b16 %v335
  %v368 = vunpack.c.l.b16 %v336
  %v369 = vunpack.c.l.b16 %v337
  %v370 = vunpack.c.l.b16 %v338
  %v371 = vunpack.c.l.b16 %v339
  %v372 = vunpack.c.l.b16 %v340
  %v373 = vunpack.c.l.b16 %v341
  %v374 = vunpack.c.l.b16 %v342
  %v375 = vunpack.c.l.b16 %v343
  %v376 = vunpack.c.l.b16 %v344
  %v377 = vunpack.c.l.b16 %v345
  %v378 = vunpack.c.l.b16 %v346
  %v379 = vunpack.c.l.b16 %v347
  %v380 = vunpack.c.l.b16 %v348
  %v381 = vunpack.c.l.b16 %v349
  %v382 = vpack.c.b16 %v367, %v366
  %v383 = vpack.c.b16 %v369, %v368
  %v384 = vpack.c.b16 %v371, %v370
  %v385 = vpack.c.b16 %v373, %v372
  %v386 = vpack.c.b16 %v375, %v374
  %v387 = vpack.c.b16 %v377, %v376
  %v388 = vpack.c.b16 %v379, %v378
  %v389 = vpack.c.b16 %v381, %v380
  %398 = vmatprep.subr.bf16.mxu0 0
  %399 = vmatpush1.bf16.msra.mxu0 %v382
  %400 = vmatprep.subr.bf16.mxu0 0
  %401 = vmatpush1.bf16.msra.mxu0 %v383
  %402 = vmatprep.subr.bf16.mxu0 0
  %403 = vmatpush1.bf16.msra.mxu0 %v384
  %404 = vmatprep.subr.bf16.mxu0 0
  %405 = vmatpush1.bf16.msra.mxu0 %v385
  %406 = vmatprep.subr.bf16.mxu0 0
  %407 = vmatpush1.bf16.msra.mxu0 %v386
  %408 = vmatprep.subr.bf16.mxu0 0
  %409 = vmatpush1.bf16.msra.mxu0 %v387
  %410 = vmatprep.subr.bf16.mxu0 0
  %411 = vmatpush1.bf16.msra.mxu0 %v388
  %412 = vmatprep.subr.bf16.mxu0 0
  %413 = vmatpush1.bf16.msra.mxu0 %v389
  %414 = vmatprep.subr.bf16.mxu0 0
  %415 = vmatpush1.bf16.msra.mxu0 0
  %416 = vmatprep.subr.bf16.mxu0 0
  %417 = vmatpush1.bf16.msra.mxu0 0
  %418 = vmatprep.subr.bf16.mxu0 0
  %419 = vmatpush1.bf16.msra.mxu0 0
  %420 = vmatprep.subr.bf16.mxu0 0
  %421 = vmatpush1.bf16.msra.mxu0 0
  %422 = vmatprep.subr.bf16.mxu0 0
  %423 = vmatpush1.bf16.msra.mxu0 0
  %424 = vmatprep.subr.bf16.mxu0 0
  %425 = vmatpush1.bf16.msra.mxu0 0
  %426 = vmatprep.subr.bf16.mxu0 0
  %427 = vmatpush1.bf16.msra.mxu0 0
  %428 = vmatprep.subr.bf16.mxu0 0
  %429 = vmatpush1.bf16.msra.mxu0 0
  %430 = vmatprep.mubr.bf16.mxu0 0
  %431 = vmatmul.mubr.bf16.gmra.mrb[0].mxu0 %v333
  %v432 = vpop.f32.mrb[0].mxu0
  %v433 = vadd.f32 0.0, %v432
  %v434 = vpop.f32.mrb[0].mxu0
  %v435 = vpop.f32.mrb[0].mxu0
  %v436 = vpop.f32.mrb[0].mxu0
  %437 = vdwg.mxu0
  %v438 = vmul.f32 %v322, 0.36787945
  %s439 = scalar_lea.vmem [#allocation4], 8
  %v440 = vld [vmem:[%s439] sm:$0xff]
  %v441 = vadd.f32 %v438, %v440
  %v442 = vadd.f32 %v441, %v433
  %v443 = vmul.f32 %v326, 0.60653067
  %v444 = vmul.f32 %v322, 0.39346933
  %v445 = vadd.f32 %v443, %v444
  %v446 = vsel %vm330, 0.0, %v445
  %s447 = scalar_lea.vmem %s5, 8
  %448 = vst [vmem:[%s447] sm:$0xff] %v446
  %s449 = scalar_lea.vmem %s6, 8
  %450 = vst [vmem:[%s449] sm:$0xff] %v442
  %s451 = scalar_lea.vmem %s7, 4
  %452 = vst [vmem:[%s451] sm:$0xf] %v333
  %vm453 = vcmp.ge.f32.partialorder %v446, 1.0
  %v454 = vsel %vm453, 1, 0
  %v455 = vcvt.s32.f32 %v454
  %v456 = vpack.c.bf16 %v455, %v455
  %v457 = vld [vmem:[%s2] sm:$0xf]
  %v458 = vld [vmem:[%s2 + $0x4] sm:$0xf]
  %v459 = vld [vmem:[%s2 + $0x8] sm:$0xf]
  %v460 = vld [vmem:[%s2 + $0xc] sm:$0xf]
  %v461 = vld [vmem:[%s2 + $0x10] sm:$0xf]
  %v462 = vld [vmem:[%s2 + $0x14] sm:$0xf]
  %v463 = vld [vmem:[%s2 + $0x18] sm:$0xf]
  %v464 = vld [vmem:[%s2 + $0x1c] sm:$0xf]
  %v465 = vld [vmem:[%s2 + $0x20] sm:$0xf]
  %v466 = vld [vmem:[%s2 + $0x24] sm:$0xf]
  %v467 = vld [vmem:[%s2 + $0x28] sm:$0xf]
  %v468 = vld [vmem:[%s2 + $0x2c] sm:$0xf]
  %v469 = vld [vmem:[%s2 + $0x30] sm:$0xf]
  %v470 = vld [vmem:[%s2 + $0x34] sm:$0xf]
  %v471 = vld [vmem:[%s2 + $0x38] sm:$0xf]
  %v472 = vld [vmem:[%s2 + $0x3c] sm:$0xf]
  %v489 = vunpack.c.l.b16 %v457
  %v490 = vunpack.c.l.b16 %v458
  %v491 = vunpack.c.l.b16 %v459
  %v492 = vunpack.c.l.b16 %v460
  %v493 = vunpack.c.l.b16 %v461
  %v494 = vunpack.c.l.b16 %v462
  %v495 = vunpack.c.l.b16 %v463
  %v496 = vunpack.c.l.b16 %v464
  %v497 = vunpack.c.l.b16 %v465
  %v498 = vunpack.c.l.b16 %v466
  %v499 = vunpack.c.l.b16 %v467
  %v500 = vunpack.c.l.b16 %v468
  %v501 = vunpack.c.l.b16 %v469
  %v502 = vunpack.c.l.b16 %v470
  %v503 = vunpack.c.l.b16 %v471
  %v504 = vunpack.c.l.b16 %v472
  %v505 = vpack.c.b16 %v490, %v489
  %v506 = vpack.c.b16 %v492, %v491
  %v507 = vpack.c.b16 %v494, %v493
  %v508 = vpack.c.b16 %v496, %v495
  %v509 = vpack.c.b16 %v498, %v497
  %v510 = vpack.c.b16 %v500, %v499
  %v511 = vpack.c.b16 %v502, %v501
  %v512 = vpack.c.b16 %v504, %v503
  %521 = vmatprep.subr.bf16.mxu0 0
  %522 = vmatpush1.bf16.msra.mxu0 %v505
  %523 = vmatprep.subr.bf16.mxu0 0
  %524 = vmatpush1.bf16.msra.mxu0 %v506
  %525 = vmatprep.subr.bf16.mxu0 0
  %526 = vmatpush1.bf16.msra.mxu0 %v507
  %527 = vmatprep.subr.bf16.mxu0 0
  %528 = vmatpush1.bf16.msra.mxu0 %v508
  %529 = vmatprep.subr.bf16.mxu0 0
  %530 = vmatpush1.bf16.msra.mxu0 %v509
  %531 = vmatprep.subr.bf16.mxu0 0
  %532 = vmatpush1.bf16.msra.mxu0 %v510
  %533 = vmatprep.subr.bf16.mxu0 0
  %534 = vmatpush1.bf16.msra.mxu0 %v511
  %535 = vmatprep.subr.bf16.mxu0 0
  %536 = vmatpush1.bf16.msra.mxu0 %v512
  %537 = vmatprep.subr.bf16.mxu0 0
  %538 = vmatpush1.bf16.msra.mxu0 0
  %539 = vmatprep.subr.bf16.mxu0 0
  %540 = vmatpush1.bf16.msra.mxu0 0
  %541 = vmatprep.subr.bf16.mxu0 0
  %542 = vmatpush1.bf16.msra.mxu0 0
  %543 = vmatprep.subr.bf16.mxu0 0
  %544 = vmatpush1.bf16.msra.mxu0 0
  %545 = vmatprep.subr.bf16.mxu0 0
  %546 = vmatpush1.bf16.msra.mxu0 0
  %547 = vmatprep.subr.bf16.mxu0 0
  %548 = vmatpush1.bf16.msra.mxu0 0
  %549 = vmatprep.subr.bf16.mxu0 0
  %550 = vmatpush1.bf16.msra.mxu0 0
  %551 = vmatprep.subr.bf16.mxu0 0
  %552 = vmatpush1.bf16.msra.mxu0 0
  %553 = vmatprep.mubr.bf16.mxu0 0
  %554 = vmatmul.mubr.bf16.gmra.mrb[0].mxu0 %v456
  %v555 = vpop.f32.mrb[0].mxu0
  %v556 = vadd.f32 0.0, %v555
  %v557 = vpop.f32.mrb[0].mxu0
  %v558 = vpop.f32.mrb[0].mxu0
  %v559 = vpop.f32.mrb[0].mxu0
  %560 = vdwg.mxu0
  %v561 = vmul.f32 %v442, 0.36787945
  %s562 = scalar_lea.vmem [#allocation4], 16
  %v563 = vld [vmem:[%s562] sm:$0xff]
  %v564 = vadd.f32 %v561, %v563
  %v565 = vadd.f32 %v564, %v556
  %v566 = vmul.f32 %v446, 0.60653067
  %v567 = vmul.f32 %v442, 0.39346933
  %v568 = vadd.f32 %v566, %v567
  %v569 = vsel %vm453, 0.0, %v568
  %s570 = scalar_lea.vmem %s5, 16
  %571 = vst [vmem:[%s570] sm:$0xff] %v569
  %s572 = scalar_lea.vmem %s6, 16
  %573 = vst [vmem:[%s572] sm:$0xff] %v565
  %s574 = scalar_lea.vmem %s7, 8
  %575 = vst [vmem:[%s574] sm:$0xf] %v456
  %vm576 = vcmp.ge.f32.partialorder %v569, 1.0
  %v577 = vsel %vm576, 1, 0
  %v578 = vcvt.s32.f32 %v577
  %v579 = vpack.c.bf16 %v578, %v578
  %v580 = vld [vmem:[%s2] sm:$0xf]
  %v581 = vld [vmem:[%s2 + $0x4] sm:$0xf]
  %v582 = vld [vmem:[%s2 + $0x8] sm:$0xf]
  %v583 = vld [vmem:[%s2 + $0xc] sm:$0xf]
  %v584 = vld [vmem:[%s2 + $0x10] sm:$0xf]
  %v585 = vld [vmem:[%s2 + $0x14] sm:$0xf]
  %v586 = vld [vmem:[%s2 + $0x18] sm:$0xf]
  %v587 = vld [vmem:[%s2 + $0x1c] sm:$0xf]
  %v588 = vld [vmem:[%s2 + $0x20] sm:$0xf]
  %v589 = vld [vmem:[%s2 + $0x24] sm:$0xf]
  %v590 = vld [vmem:[%s2 + $0x28] sm:$0xf]
  %v591 = vld [vmem:[%s2 + $0x2c] sm:$0xf]
  %v592 = vld [vmem:[%s2 + $0x30] sm:$0xf]
  %v593 = vld [vmem:[%s2 + $0x34] sm:$0xf]
  %v594 = vld [vmem:[%s2 + $0x38] sm:$0xf]
  %v595 = vld [vmem:[%s2 + $0x3c] sm:$0xf]
  %v612 = vunpack.c.l.b16 %v580
  %v613 = vunpack.c.l.b16 %v581
  %v614 = vunpack.c.l.b16 %v582
  %v615 = vunpack.c.l.b16 %v583
  %v616 = vunpack.c.l.b16 %v584
  %v617 = vunpack.c.l.b16 %v585
  %v618 = vunpack.c.l.b16 %v586
  %v619 = vunpack.c.l.b16 %v587
  %v620 = vunpack.c.l.b16 %v588
  %v621 = vunpack.c.l.b16 %v589
  %v622 = vunpack.c.l.b16 %v590
  %v623 = vunpack.c.l.b16 %v591
  %v624 = vunpack.c.l.b16 %v592
  %v625 = vunpack.c.l.b16 %v593
  %v626 = vunpack.c.l.b16 %v594
  %v627 = vunpack.c.l.b16 %v595
  %v628 = vpack.c.b16 %v613, %v612
  %v629 = vpack.c.b16 %v615, %v614
  %v630 = vpack.c.b16 %v617, %v616
  %v631 = vpack.c.b16 %v619, %v618
  %v632 = vpack.c.b16 %v621, %v620
  %v633 = vpack.c.b16 %v623, %v622
  %v634 = vpack.c.b16 %v625, %v624
  %v635 = vpack.c.b16 %v627, %v626
  %644 = vmatprep.subr.bf16.mxu0 0
  %645 = vmatpush1.bf16.msra.mxu0 %v628
  %646 = vmatprep.subr.bf16.mxu0 0
  %647 = vmatpush1.bf16.msra.mxu0 %v629
  %648 = vmatprep.subr.bf16.mxu0 0
  %649 = vmatpush1.bf16.msra.mxu0 %v630
  %650 = vmatprep.subr.bf16.mxu0 0
  %651 = vmatpush1.bf16.msra.mxu0 %v631
  %652 = vmatprep.subr.bf16.mxu0 0
  %653 = vmatpush1.bf16.msra.mxu0 %v632
  %654 = vmatprep.subr.bf16.mxu0 0
  %655 = vmatpush1.bf16.msra.mxu0 %v633
  %656 = vmatprep.subr.bf16.mxu0 0
  %657 = vmatpush1.bf16.msra.mxu0 %v634
  %658 = vmatprep.subr.bf16.mxu0 0
  %659 = vmatpush1.bf16.msra.mxu0 %v635
  %660 = vmatprep.subr.bf16.mxu0 0
  %661 = vmatpush1.bf16.msra.mxu0 0
  %662 = vmatprep.subr.bf16.mxu0 0
  %663 = vmatpush1.bf16.msra.mxu0 0
  %664 = vmatprep.subr.bf16.mxu0 0
  %665 = vmatpush1.bf16.msra.mxu0 0
  %666 = vmatprep.subr.bf16.mxu0 0
  %667 = vmatpush1.bf16.msra.mxu0 0
  %668 = vmatprep.subr.bf16.mxu0 0
  %669 = vmatpush1.bf16.msra.mxu0 0
  %670 = vmatprep.subr.bf16.mxu0 0
  %671 = vmatpush1.bf16.msra.mxu0 0
  %672 = vmatprep.subr.bf16.mxu0 0
  %673 = vmatpush1.bf16.msra.mxu0 0
  %674 = vmatprep.subr.bf16.mxu0 0
  %675 = vmatpush1.bf16.msra.mxu0 0
  %676 = vmatprep.mubr.bf16.mxu0 0
  %677 = vmatmul.mubr.bf16.gmra.mrb[0].mxu0 %v579
  %v678 = vpop.f32.mrb[0].mxu0
  %v679 = vadd.f32 0.0, %v678
  %v680 = vpop.f32.mrb[0].mxu0
  %v681 = vpop.f32.mrb[0].mxu0
  %v682 = vpop.f32.mrb[0].mxu0
  %683 = vdwg.mxu0
  %v684 = vmul.f32 %v565, 0.36787945
  %s685 = scalar_lea.vmem [#allocation4], 24
  %v686 = vld [vmem:[%s685] sm:$0xff]
  %v687 = vadd.f32 %v684, %v686
  %v688 = vadd.f32 %v687, %v679
  %v689 = vmul.f32 %v569, 0.60653067
  %v690 = vmul.f32 %v565, 0.39346933
  %v691 = vadd.f32 %v689, %v690
  %v692 = vsel %vm576, 0.0, %v691
  %s693 = scalar_lea.vmem %s5, 24
  %694 = vst [vmem:[%s693] sm:$0xff] %v692
  %s695 = scalar_lea.vmem %s6, 24
  %696 = vst [vmem:[%s695] sm:$0xff] %v688
  %s697 = scalar_lea.vmem %s7, 12
  %698 = vst [vmem:[%s697] sm:$0xf] %v579
  %vm699 = vcmp.ge.f32.partialorder %v692, 1.0
  %v700 = vsel %vm699, 1, 0
  %v701 = vcvt.s32.f32 %v700
  %v702 = vpack.c.bf16 %v701, %v701
  %v703 = vld [vmem:[%s2] sm:$0xf]
  %v704 = vld [vmem:[%s2 + $0x4] sm:$0xf]
  %v705 = vld [vmem:[%s2 + $0x8] sm:$0xf]
  %v706 = vld [vmem:[%s2 + $0xc] sm:$0xf]
  %v707 = vld [vmem:[%s2 + $0x10] sm:$0xf]
  %v708 = vld [vmem:[%s2 + $0x14] sm:$0xf]
  %v709 = vld [vmem:[%s2 + $0x18] sm:$0xf]
  %v710 = vld [vmem:[%s2 + $0x1c] sm:$0xf]
  %v711 = vld [vmem:[%s2 + $0x20] sm:$0xf]
  %v712 = vld [vmem:[%s2 + $0x24] sm:$0xf]
  %v713 = vld [vmem:[%s2 + $0x28] sm:$0xf]
  %v714 = vld [vmem:[%s2 + $0x2c] sm:$0xf]
  %v715 = vld [vmem:[%s2 + $0x30] sm:$0xf]
  %v716 = vld [vmem:[%s2 + $0x34] sm:$0xf]
  %v717 = vld [vmem:[%s2 + $0x38] sm:$0xf]
  %v718 = vld [vmem:[%s2 + $0x3c] sm:$0xf]
  %v735 = vunpack.c.l.b16 %v703
  %v736 = vunpack.c.l.b16 %v704
  %v737 = vunpack.c.l.b16 %v705
  %v738 = vunpack.c.l.b16 %v706
  %v739 = vunpack.c.l.b16 %v707
  %v740 = vunpack.c.l.b16 %v708
  %v741 = vunpack.c.l.b16 %v709
  %v742 = vunpack.c.l.b16 %v710
  %v743 = vunpack.c.l.b16 %v711
  %v744 = vunpack.c.l.b16 %v712
  %v745 = vunpack.c.l.b16 %v713
  %v746 = vunpack.c.l.b16 %v714
  %v747 = vunpack.c.l.b16 %v715
  %v748 = vunpack.c.l.b16 %v716
  %v749 = vunpack.c.l.b16 %v717
  %v750 = vunpack.c.l.b16 %v718
  %v751 = vpack.c.b16 %v736, %v735
  %v752 = vpack.c.b16 %v738, %v737
  %v753 = vpack.c.b16 %v740, %v739
  %v754 = vpack.c.b16 %v742, %v741
  %v755 = vpack.c.b16 %v744, %v743
  %v756 = vpack.c.b16 %v746, %v745
  %v757 = vpack.c.b16 %v748, %v747
  %v758 = vpack.c.b16 %v750, %v749
  %767 = vmatprep.subr.bf16.mxu0 0
  %768 = vmatpush1.bf16.msra.mxu0 %v751
  %769 = vmatprep.subr.bf16.mxu0 0
  %770 = vmatpush1.bf16.msra.mxu0 %v752
  %771 = vmatprep.subr.bf16.mxu0 0
  %772 = vmatpush1.bf16.msra.mxu0 %v753
  %773 = vmatprep.subr.bf16.mxu0 0
  %774 = vmatpush1.bf16.msra.mxu0 %v754
  %775 = vmatprep.subr.bf16.mxu0 0
  %776 = vmatpush1.bf16.msra.mxu0 %v755
  %777 = vmatprep.subr.bf16.mxu0 0
  %778 = vmatpush1.bf16.msra.mxu0 %v756
  %779 = vmatprep.subr.bf16.mxu0 0
  %780 = vmatpush1.bf16.msra.mxu0 %v757
  %781 = vmatprep.subr.bf16.mxu0 0
  %782 = vmatpush1.bf16.msra.mxu0 %v758
  %783 = vmatprep.subr.bf16.mxu0 0
  %784 = vmatpush1.bf16.msra.mxu0 0
  %785 = vmatprep.subr.bf16.mxu0 0
  %786 = vmatpush1.bf16.msra.mxu0 0
  %787 = vmatprep.subr.bf16.mxu0 0
  %788 = vmatpush1.bf16.msra.mxu0 0
  %789 = vmatprep.subr.bf16.mxu0 0
  %790 = vmatpush1.bf16.msra.mxu0 0
  %791 = vmatprep.subr.bf16.mxu0 0
  %792 = vmatpush1.bf16.msra.mxu0 0
  %793 = vmatprep.subr.bf16.mxu0 0
  %794 = vmatpush1.bf16.msra.mxu0 0
  %795 = vmatprep.subr.bf16.mxu0 0
  %796 = vmatpush1.bf16.msra.mxu0 0
  %797 = vmatprep.subr.bf16.mxu0 0
  %798 = vmatpush1.bf16.msra.mxu0 0
  %799 = vmatprep.mubr.bf16.mxu0 0
  %800 = vmatmul.mubr.bf16.gmra.mrb[0].mxu0 %v702
  %v801 = vpop.f32.mrb[0].mxu0
  %v802 = vadd.f32 0.0, %v801
  %v803 = vpop.f32.mrb[0].mxu0
  %v804 = vpop.f32.mrb[0].mxu0
  %v805 = vpop.f32.mrb[0].mxu0
  %806 = vdwg.mxu0
  %v807 = vmul.f32 %v688, 0.36787945
  %s808 = scalar_lea.vmem [#allocation4], 32
  %v809 = vld [vmem:[%s808] sm:$0xff]
  %v810 = vadd.f32 %v807, %v809
  %v811 = vadd.f32 %v810, %v802
  %v812 = vmul.f32 %v692, 0.60653067
  %v813 = vmul.f32 %v688, 0.39346933
  %v814 = vadd.f32 %v812, %v813
  %v815 = vsel %vm699, 0.0, %v814
  %s816 = scalar_lea.vmem %s5, 32
  %817 = vst [vmem:[%s816] sm:$0xff] %v815
  %s818 = scalar_lea.vmem %s6, 32
  %819 = vst [vmem:[%s818] sm:$0xff] %v811
  %s820 = scalar_lea.vmem %s7, 16
  %821 = vst [vmem:[%s820] sm:$0xf] %v702
  %vm822 = vcmp.ge.f32.partialorder %v815, 1.0
  %v823 = vsel %vm822, 1, 0
  %v824 = vcvt.s32.f32 %v823
  %v825 = vpack.c.bf16 %v824, %v824
  %v826 = vld [vmem:[%s2] sm:$0xf]
  %v827 = vld [vmem:[%s2 + $0x4] sm:$0xf]
  %v828 = vld [vmem:[%s2 + $0x8] sm:$0xf]
  %v829 = vld [vmem:[%s2 + $0xc] sm:$0xf]
  %v830 = vld [vmem:[%s2 + $0x10] sm:$0xf]
  %v831 = vld [vmem:[%s2 + $0x14] sm:$0xf]
  %v832 = vld [vmem:[%s2 + $0x18] sm:$0xf]
  %v833 = vld [vmem:[%s2 + $0x1c] sm:$0xf]
  %v834 = vld [vmem:[%s2 + $0x20] sm:$0xf]
  %v835 = vld [vmem:[%s2 + $0x24] sm:$0xf]
  %v836 = vld [vmem:[%s2 + $0x28] sm:$0xf]
  %v837 = vld [vmem:[%s2 + $0x2c] sm:$0xf]
  %v838 = vld [vmem:[%s2 + $0x30] sm:$0xf]
  %v839 = vld [vmem:[%s2 + $0x34] sm:$0xf]
  %v840 = vld [vmem:[%s2 + $0x38] sm:$0xf]
  %v841 = vld [vmem:[%s2 + $0x3c] sm:$0xf]
  %v858 = vunpack.c.l.b16 %v826
  %v859 = vunpack.c.l.b16 %v827
  %v860 = vunpack.c.l.b16 %v828
  %v861 = vunpack.c.l.b16 %v829
  %v862 = vunpack.c.l.b16 %v830
  %v863 = vunpack.c.l.b16 %v831
  %v864 = vunpack.c.l.b16 %v832
  %v865 = vunpack.c.l.b16 %v833
  %v866 = vunpack.c.l.b16 %v834
  %v867 = vunpack.c.l.b16 %v835
  %v868 = vunpack.c.l.b16 %v836
  %v869 = vunpack.c.l.b16 %v837
  %v870 = vunpack.c.l.b16 %v838
  %v871 = vunpack.c.l.b16 %v839
  %v872 = vunpack.c.l.b16 %v840
  %v873 = vunpack.c.l.b16 %v841
  %v874 = vpack.c.b16 %v859, %v858
  %v875 = vpack.c.b16 %v861, %v860
  %v876 = vpack.c.b16 %v863, %v862
  %v877 = vpack.c.b16 %v865, %v864
  %v878 = vpack.c.b16 %v867, %v866
  %v879 = vpack.c.b16 %v869, %v868
  %v880 = vpack.c.b16 %v871, %v870
  %v881 = vpack.c.b16 %v873, %v872
  %890 = vmatprep.subr.bf16.mxu0 0
  %891 = vmatpush1.bf16.msra.mxu0 %v874
  %892 = vmatprep.subr.bf16.mxu0 0
  %893 = vmatpush1.bf16.msra.mxu0 %v875
  %894 = vmatprep.subr.bf16.mxu0 0
  %895 = vmatpush1.bf16.msra.mxu0 %v876
  %896 = vmatprep.subr.bf16.mxu0 0
  %897 = vmatpush1.bf16.msra.mxu0 %v877
  %898 = vmatprep.subr.bf16.mxu0 0
  %899 = vmatpush1.bf16.msra.mxu0 %v878
  %900 = vmatprep.subr.bf16.mxu0 0
  %901 = vmatpush1.bf16.msra.mxu0 %v879
  %902 = vmatprep.subr.bf16.mxu0 0
  %903 = vmatpush1.bf16.msra.mxu0 %v880
  %904 = vmatprep.subr.bf16.mxu0 0
  %905 = vmatpush1.bf16.msra.mxu0 %v881
  %906 = vmatprep.subr.bf16.mxu0 0
  %907 = vmatpush1.bf16.msra.mxu0 0
  %908 = vmatprep.subr.bf16.mxu0 0
  %909 = vmatpush1.bf16.msra.mxu0 0
  %910 = vmatprep.subr.bf16.mxu0 0
  %911 = vmatpush1.bf16.msra.mxu0 0
  %912 = vmatprep.subr.bf16.mxu0 0
  %913 = vmatpush1.bf16.msra.mxu0 0
  %914 = vmatprep.subr.bf16.mxu0 0
  %915 = vmatpush1.bf16.msra.mxu0 0
  %916 = vmatprep.subr.bf16.mxu0 0
  %917 = vmatpush1.bf16.msra.mxu0 0
  %918 = vmatprep.subr.bf16.mxu0 0
  %919 = vmatpush1.bf16.msra.mxu0 0
  %920 = vmatprep.subr.bf16.mxu0 0
  %921 = vmatpush1.bf16.msra.mxu0 0
  %922 = vmatprep.mubr.bf16.mxu0 0
  %923 = vmatmul.mubr.bf16.gmra.mrb[0].mxu0 %v825
  %v924 = vpop.f32.mrb[0].mxu0
  %v925 = vadd.f32 0.0, %v924
  %v926 = vpop.f32.mrb[0].mxu0
  %v927 = vpop.f32.mrb[0].mxu0
  %v928 = vpop.f32.mrb[0].mxu0
  %929 = vdwg.mxu0
  %v930 = vmul.f32 %v811, 0.36787945
  %s931 = scalar_lea.vmem [#allocation4], 40
  %v932 = vld [vmem:[%s931] sm:$0xff]
  %v933 = vadd.f32 %v930, %v932
  %v934 = vadd.f32 %v933, %v925
  %v935 = vmul.f32 %v815, 0.60653067
  %v936 = vmul.f32 %v811, 0.39346933
  %v937 = vadd.f32 %v935, %v936
  %v938 = vsel %vm822, 0.0, %v937
  %s939 = scalar_lea.vmem %s5, 40
  %940 = vst [vmem:[%s939] sm:$0xff] %v938
  %s941 = scalar_lea.vmem %s6, 40
  %942 = vst [vmem:[%s941] sm:$0xff] %v934
  %s943 = scalar_lea.vmem %s7, 20
  %944 = vst [vmem:[%s943] sm:$0xf] %v825
  %vm945 = vcmp.ge.f32.partialorder %v938, 1.0
  %v946 = vsel %vm945, 1, 0
  %v947 = vcvt.s32.f32 %v946
  %v948 = vpack.c.bf16 %v947, %v947
  %v949 = vld [vmem:[%s2] sm:$0xf]
  %v950 = vld [vmem:[%s2 + $0x4] sm:$0xf]
  %v951 = vld [vmem:[%s2 + $0x8] sm:$0xf]
  %v952 = vld [vmem:[%s2 + $0xc] sm:$0xf]
  %v953 = vld [vmem:[%s2 + $0x10] sm:$0xf]
  %v954 = vld [vmem:[%s2 + $0x14] sm:$0xf]
  %v955 = vld [vmem:[%s2 + $0x18] sm:$0xf]
  %v956 = vld [vmem:[%s2 + $0x1c] sm:$0xf]
  %v957 = vld [vmem:[%s2 + $0x20] sm:$0xf]
  %v958 = vld [vmem:[%s2 + $0x24] sm:$0xf]
  %v959 = vld [vmem:[%s2 + $0x28] sm:$0xf]
  %v960 = vld [vmem:[%s2 + $0x2c] sm:$0xf]
  %v961 = vld [vmem:[%s2 + $0x30] sm:$0xf]
  %v962 = vld [vmem:[%s2 + $0x34] sm:$0xf]
  %v963 = vld [vmem:[%s2 + $0x38] sm:$0xf]
  %v964 = vld [vmem:[%s2 + $0x3c] sm:$0xf]
  %v981 = vunpack.c.l.b16 %v949
  %v982 = vunpack.c.l.b16 %v950
  %v983 = vunpack.c.l.b16 %v951
  %v984 = vunpack.c.l.b16 %v952
  %v985 = vunpack.c.l.b16 %v953
  %v986 = vunpack.c.l.b16 %v954
  %v987 = vunpack.c.l.b16 %v955
  %v988 = vunpack.c.l.b16 %v956
  %v989 = vunpack.c.l.b16 %v957
  %v990 = vunpack.c.l.b16 %v958
  %v991 = vunpack.c.l.b16 %v959
  %v992 = vunpack.c.l.b16 %v960
  %v993 = vunpack.c.l.b16 %v961
  %v994 = vunpack.c.l.b16 %v962
  %v995 = vunpack.c.l.b16 %v963
  %v996 = vunpack.c.l.b16 %v964
  %v997 = vpack.c.b16 %v982, %v981
  %v998 = vpack.c.b16 %v984, %v983
  %v999 = vpack.c.b16 %v986, %v985
  %v1000 = vpack.c.b16 %v988, %v987
  %v1001 = vpack.c.b16 %v990, %v989
  %v1002 = vpack.c.b16 %v992, %v991
  %v1003 = vpack.c.b16 %v994, %v993
  %v1004 = vpack.c.b16 %v996, %v995
  %1013 = vmatprep.subr.bf16.mxu0 0
  %1014 = vmatpush1.bf16.msra.mxu0 %v997
  %1015 = vmatprep.subr.bf16.mxu0 0
  %1016 = vmatpush1.bf16.msra.mxu0 %v998
  %1017 = vmatprep.subr.bf16.mxu0 0
  %1018 = vmatpush1.bf16.msra.mxu0 %v999
  %1019 = vmatprep.subr.bf16.mxu0 0
  %1020 = vmatpush1.bf16.msra.mxu0 %v1000
  %1021 = vmatprep.subr.bf16.mxu0 0
  %1022 = vmatpush1.bf16.msra.mxu0 %v1001
  %1023 = vmatprep.subr.bf16.mxu0 0
  %1024 = vmatpush1.bf16.msra.mxu0 %v1002
  %1025 = vmatprep.subr.bf16.mxu0 0
  %1026 = vmatpush1.bf16.msra.mxu0 %v1003
  %1027 = vmatprep.subr.bf16.mxu0 0
  %1028 = vmatpush1.bf16.msra.mxu0 %v1004
  %1029 = vmatprep.subr.bf16.mxu0 0
  %1030 = vmatpush1.bf16.msra.mxu0 0
  %1031 = vmatprep.subr.bf16.mxu0 0
  %1032 = vmatpush1.bf16.msra.mxu0 0
  %1033 = vmatprep.subr.bf16.mxu0 0
  %1034 = vmatpush1.bf16.msra.mxu0 0
  %1035 = vmatprep.subr.bf16.mxu0 0
  %1036 = vmatpush1.bf16.msra.mxu0 0
  %1037 = vmatprep.subr.bf16.mxu0 0
  %1038 = vmatpush1.bf16.msra.mxu0 0
  %1039 = vmatprep.subr.bf16.mxu0 0
  %1040 = vmatpush1.bf16.msra.mxu0 0
  %1041 = vmatprep.subr.bf16.mxu0 0
  %1042 = vmatpush1.bf16.msra.mxu0 0
  %1043 = vmatprep.subr.bf16.mxu0 0
  %1044 = vmatpush1.bf16.msra.mxu0 0
  %1045 = vmatprep.mubr.bf16.mxu0 0
  %1046 = vmatmul.mubr.bf16.gmra.mrb[0].mxu0 %v948
  %v1047 = vpop.f32.mrb[0].mxu0
  %v1048 = vadd.f32 0.0, %v1047
  %v1049 = vpop.f32.mrb[0].mxu0
  %v1050 = vpop.f32.mrb[0].mxu0
  %v1051 = vpop.f32.mrb[0].mxu0
  %1052 = vdwg.mxu0
  %v1053 = vmul.f32 %v934, 0.36787945
  %s1054 = scalar_lea.vmem [#allocation4], 48
  %v1055 = vld [vmem:[%s1054] sm:$0xff]
  %v1056 = vadd.f32 %v1053, %v1055
  %v1057 = vadd.f32 %v1056, %v1048
  %v1058 = vmul.f32 %v938, 0.60653067
  %v1059 = vmul.f32 %v934, 0.39346933
  %v1060 = vadd.f32 %v1058, %v1059
  %v1061 = vsel %vm945, 0.0, %v1060
  %s1062 = scalar_lea.vmem %s5, 48
  %1063 = vst [vmem:[%s1062] sm:$0xff] %v1061
  %s1064 = scalar_lea.vmem %s6, 48
  %1065 = vst [vmem:[%s1064] sm:$0xff] %v1057
  %s1066 = scalar_lea.vmem %s7, 24
  %1067 = vst [vmem:[%s1066] sm:$0xf] %v948
  %vm1068 = vcmp.ge.f32.partialorder %v1061, 1.0
  %v1069 = vsel %vm1068, 1, 0
  %v1070 = vcvt.s32.f32 %v1069
  %v1071 = vpack.c.bf16 %v1070, %v1070
  %v1072 = vld [vmem:[%s2] sm:$0xf]
  %v1073 = vld [vmem:[%s2 + $0x4] sm:$0xf]
  %v1074 = vld [vmem:[%s2 + $0x8] sm:$0xf]
  %v1075 = vld [vmem:[%s2 + $0xc] sm:$0xf]
  %v1076 = vld [vmem:[%s2 + $0x10] sm:$0xf]
  %v1077 = vld [vmem:[%s2 + $0x14] sm:$0xf]
  %v1078 = vld [vmem:[%s2 + $0x18] sm:$0xf]
  %v1079 = vld [vmem:[%s2 + $0x1c] sm:$0xf]
  %v1080 = vld [vmem:[%s2 + $0x20] sm:$0xf]
  %v1081 = vld [vmem:[%s2 + $0x24] sm:$0xf]
  %v1082 = vld [vmem:[%s2 + $0x28] sm:$0xf]
  %v1083 = vld [vmem:[%s2 + $0x2c] sm:$0xf]
  %v1084 = vld [vmem:[%s2 + $0x30] sm:$0xf]
  %v1085 = vld [vmem:[%s2 + $0x34] sm:$0xf]
  %v1086 = vld [vmem:[%s2 + $0x38] sm:$0xf]
  %v1087 = vld [vmem:[%s2 + $0x3c] sm:$0xf]
  %v1104 = vunpack.c.l.b16 %v1072
  %v1105 = vunpack.c.l.b16 %v1073
  %v1106 = vunpack.c.l.b16 %v1074
  %v1107 = vunpack.c.l.b16 %v1075
  %v1108 = vunpack.c.l.b16 %v1076
  %v1109 = vunpack.c.l.b16 %v1077
  %v1110 = vunpack.c.l.b16 %v1078
  %v1111 = vunpack.c.l.b16 %v1079
  %v1112 = vunpack.c.l.b16 %v1080
  %v1113 = vunpack.c.l.b16 %v1081
  %v1114 = vunpack.c.l.b16 %v1082
  %v1115 = vunpack.c.l.b16 %v1083
  %v1116 = vunpack.c.l.b16 %v1084
  %v1117 = vunpack.c.l.b16 %v1085
  %v1118 = vunpack.c.l.b16 %v1086
  %v1119 = vunpack.c.l.b16 %v1087
  %v1120 = vpack.c.b16 %v1105, %v1104
  %v1121 = vpack.c.b16 %v1107, %v1106
  %v1122 = vpack.c.b16 %v1109, %v1108
  %v1123 = vpack.c.b16 %v1111, %v1110
  %v1124 = vpack.c.b16 %v1113, %v1112
  %v1125 = vpack.c.b16 %v1115, %v1114
  %v1126 = vpack.c.b16 %v1117, %v1116
  %v1127 = vpack.c.b16 %v1119, %v1118
  %1136 = vmatprep.subr.bf16.mxu0 0
  %1137 = vmatpush1.bf16.msra.mxu0 %v1120
  %1138 = vmatprep.subr.bf16.mxu0 0
  %1139 = vmatpush1.bf16.msra.mxu0 %v1121
  %1140 = vmatprep.subr.bf16.mxu0 0
  %1141 = vmatpush1.bf16.msra.mxu0 %v1122
  %1142 = vmatprep.subr.bf16.mxu0 0
  %1143 = vmatpush1.bf16.msra.mxu0 %v1123
  %1144 = vmatprep.subr.bf16.mxu0 0
  %1145 = vmatpush1.bf16.msra.mxu0 %v1124
  %1146 = vmatprep.subr.bf16.mxu0 0
  %1147 = vmatpush1.bf16.msra.mxu0 %v1125
  %1148 = vmatprep.subr.bf16.mxu0 0
  %1149 = vmatpush1.bf16.msra.mxu0 %v1126
  %1150 = vmatprep.subr.bf16.mxu0 0
  %1151 = vmatpush1.bf16.msra.mxu0 %v1127
  %1152 = vmatprep.subr.bf16.mxu0 0
  %1153 = vmatpush1.bf16.msra.mxu0 0
  %1154 = vmatprep.subr.bf16.mxu0 0
  %1155 = vmatpush1.bf16.msra.mxu0 0
  %1156 = vmatprep.subr.bf16.mxu0 0
  %1157 = vmatpush1.bf16.msra.mxu0 0
  %1158 = vmatprep.subr.bf16.mxu0 0
  %1159 = vmatpush1.bf16.msra.mxu0 0
  %1160 = vmatprep.subr.bf16.mxu0 0
  %1161 = vmatpush1.bf16.msra.mxu0 0
  %1162 = vmatprep.subr.bf16.mxu0 0
  %1163 = vmatpush1.bf16.msra.mxu0 0
  %1164 = vmatprep.subr.bf16.mxu0 0
  %1165 = vmatpush1.bf16.msra.mxu0 0
  %1166 = vmatprep.subr.bf16.mxu0 0
  %1167 = vmatpush1.bf16.msra.mxu0 0
  %1168 = vmatprep.mubr.bf16.mxu0 0
  %1169 = vmatmul.mubr.bf16.gmra.mrb[0].mxu0 %v1071
  %v1170 = vpop.f32.mrb[0].mxu0
  %v1171 = vadd.f32 0.0, %v1170
  %v1172 = vpop.f32.mrb[0].mxu0
  %v1173 = vpop.f32.mrb[0].mxu0
  %v1174 = vpop.f32.mrb[0].mxu0
  %1175 = vdwg.mxu0
  %v1176 = vmul.f32 %v1057, 0.36787945
  %s1177 = scalar_lea.vmem [#allocation4], 56
  %v1178 = vld [vmem:[%s1177] sm:$0xff]
  %v1179 = vadd.f32 %v1176, %v1178
  %v1180 = vadd.f32 %v1179, %v1171
  %v1181 = vmul.f32 %v1061, 0.60653067
  %v1182 = vmul.f32 %v1057, 0.39346933
  %v1183 = vadd.f32 %v1181, %v1182
  %v1184 = vsel %vm1068, 0.0, %v1183
  %s1185 = scalar_lea.vmem %s5, 56
  %1186 = vst [vmem:[%s1185] sm:$0xff] %v1184
  %s1187 = scalar_lea.vmem %s6, 56
  %1188 = vst [vmem:[%s1187] sm:$0xff] %v1180
  %s1189 = scalar_lea.vmem %s7, 28
  %1190 = vst [vmem:[%s1189] sm:$0xf] %v1071
  %1191 = vst [vmem:[#allocation2] sm:$0xff] %v1184
  %1192 = vst [vmem:[#allocation3] sm:$0xff] %v1180
  // Predicated region
  $region26: #{snn_layer_forward.1} parent=0 // pred_check
    _
  $region27: #{snn_layer_forward.1} parent=0 // pred_check_branch
    %1194 = sbr.rel (0) target = $region29
  $region28: #{snn_layer_forward.1} parent=0 // pred_region
    _
  $region29: #{snn_layer_forward.1} parent=0 // pred_fallthru
    _
  // Predicated region
  $region30: #{snn_layer_forward.1} parent=0 // pred_check
    _
  $region31: #{snn_layer_forward.1} parent=0 // pred_check_branch
    %1196 = sbr.rel (0) target = $region33
  $region32: #{snn_layer_forward.1} parent=0 // pred_region
    _
  $region33: #{snn_layer_forward.1} parent=0 // pred_fallthru
    _
  // Predicated region
  $region34: #{snn_layer_forward.1} parent=0 // pred_check
    _
  $region35: #{snn_layer_forward.1} parent=0 // pred_check_branch
    %1198 = sbr.rel (0) target = $region37
  $region36: #{snn_layer_forward.1} parent=0 // pred_region
    _
  $region37: #{snn_layer_forward.1} parent=0 // pred_fallthru
    _
  // Predicated region
  $region38: #{snn_layer_forward.1} parent=0 // pred_check
    _
  $region39: #{snn_layer_forward.1} parent=0 // pred_check_branch
    %1200 = sbr.rel (0) target = $region41
  $region40: #{snn_layer_forward.1} parent=0 // pred_region
    _
  $region41: #{snn_layer_forward.1} parent=0 // pred_fallthru
    _
  // Predicated region
  $region42: #{snn_layer_forward.1} parent=0 // pred_check
    _
  $region43: #{snn_layer_forward.1} parent=0 // pred_check_branch
    %1202 = sbr.rel (0) target = $region45
  $region44: #{snn_layer_forward.1} parent=0 // pred_region
    _
  $region45: #{snn_layer_forward.1} parent=0 // pred_fallthru
    _
  // Predicated region
  $region46: #{snn_layer_forward.1} parent=0 // pred_check
    _
  $region47: #{snn_layer_forward.1} parent=0 // pred_check_branch
    %1204 = sbr.rel (0) target = $region49
  $region48: #{snn_layer_forward.1} parent=0 // pred_region
    _
  $region49: #{snn_layer_forward.1} parent=0 // pred_fallthru
    _

</llo_original>
